<compile_context>
chip_gen: v7x
topology: tpu7x:2x2x1
jax: 0.10.0
libtpu: 0.0.40
codegen_flags: <defaults>
</compile_context>

<pallas_src>
import functools
import math

import jax
import jax.numpy as jnp
from jax.experimental import pallas as pl
from jax.experimental.pallas import tpu as pltpu


def _round_up(n, m):
    return ((n + m - 1) // m) * m


def _pad_to(x, shape):
    if tuple(x.shape) == tuple(shape):
        return x
    widths = [(0, t - s) for s, t in zip(x.shape, shape)]
    return jnp.pad(x, widths)


def _transformer_block_kernel(q_ref, k_ref, v_ref,
                              w1t_ref, b1_ref, w2t_ref, b2_ref,
                              g_ref, beta_ref,
                              o_ref,
                              *, is_layer_norm: bool, scale: float,
                              ln_eps: float, d_real: int):
    # q_ref: (Bt, Trp, Dp) f32, k_ref/v_ref: (Bt, Tu, Dp) bf16
    # w*t_ref: (Dp, Dp) bf16 (pre-transposed), b*/gamma/beta: (1, Dp) f32
    q32 = q_ref[...]
    # Fold the softmax scale into Q (Bt*Tr*D mults instead of Bt*Tr*Tu).
    qb = (q32 * jnp.float32(scale)).astype(jnp.bfloat16)
    kb = k_ref[...]
    vb = v_ref[...]

    # Attention scores: contract last dims (no K transpose), bf16 operands,
    # f32 accumulation on the MXU.  (Bt, Trp, Tu)
    # TODO(synk): above a Tu threshold (derived from the VMEM budget) switch
    # to a Tu-tiled online-softmax accumulator instead of materializing s/e/p.
    s = jnp.einsum('brd,bud->bru', qb, kb, preferred_element_type=jnp.float32)

    # Softmax along the key axis (f32 VPU math; reciprocal on the EUP).
    m = jnp.max(s, axis=-1, keepdims=True)
    e = jnp.exp(s - m)
    p = e * pl.reciprocal(jnp.sum(e, axis=-1, keepdims=True), approx=True)

    # Attention output: (Bt, Trp, Dp), bf16 operands, f32 accumulation.
    v_att = jnp.einsum('bru,bud->brd', p.astype(jnp.bfloat16), vb,
                       preferred_element_type=jnp.float32)

    bt, trp, dp = q32.shape          # static block shape
    n = bt * trp

    # Column mask so LayerNorm statistics only see the real (unpadded) dims.
    if d_real < dp:
        col = jax.lax.broadcasted_iota(jnp.int32, (1, dp), 1)
        mask = (col < d_real).astype(jnp.float32)
    else:
        mask = None
    inv_d = jnp.float32(1.0 / float(d_real))

    def layer_norm(x):               # x: (N, Dp) f32; shared gamma/beta
        xm = x if mask is None else x * mask
        mu = jnp.sum(xm, axis=-1, keepdims=True) * inv_d
        diff = x - mu
        if mask is not None:
            diff = diff * mask
        var = jnp.sum(diff * diff, axis=-1, keepdims=True) * inv_d
        xn = diff * jax.lax.rsqrt(var + jnp.float32(ln_eps))
        return xn * g_ref[...] + beta_ref[...]

    # Residual; flatten (Bt, Trp, Dp) -> (Bt*Trp, Dp).  Dp % 128 == 0 and
    # Trp % 8 == 0, so this is a free re-view and the FFN runs as one larger
    # lane-dense MXU matmul per layer.
    x = (q32 + v_att).reshape(n, dp)
    if is_layer_norm:
        x = layer_norm(x)

    # FFN: linear2(relu(linear1(x)))  (weights pre-transposed: y = x @ W^T + b)
    h = jnp.maximum(
        jnp.dot(x.astype(jnp.bfloat16), w1t_ref[...],
                preferred_element_type=jnp.float32) + b1_ref[...], 0.0)
    f = jnp.dot(h.astype(jnp.bfloat16), w2t_ref[...],
                preferred_element_type=jnp.float32) + b2_ref[...]

    out = f + x
    if is_layer_norm:
        out = layer_norm(out)

    o_ref[...] = out.reshape(bt, trp, dp).astype(o_ref.dtype)


def prepare_params(w1, b1, w2, b2, gamma=None, beta=None):
    """One-time parameter prep: pad D to a multiple of 128, transpose,
    bf16-cast weights.  Hoisted out of the forward call."""
    D = w1.shape[0]
    Dp = _round_up(D, 128)
    if gamma is None:
        gamma = jnp.ones((D,), jnp.float32)
    if beta is None:
        beta = jnp.zeros((D,), jnp.float32)

    def pad2(w):
        w = jnp.asarray(w, jnp.float32)
        return jnp.pad(w, ((0, Dp - D), (0, Dp - D)))

    def pad1(v):
        v = jnp.asarray(v, jnp.float32)
        return jnp.pad(v, ((0, Dp - D),)).reshape(1, Dp)

    return dict(
        w1t=pad2(w1).T.astype(jnp.bfloat16),
        w2t=pad2(w2).T.astype(jnp.bfloat16),
        b1=pad1(b1), b2=pad1(b2),
        gamma=pad1(gamma), beta=pad1(beta),
        d=D, dp=Dp,
    )


def _vmem_limit_bytes():
    """Generation-aware VMEM limit: ~3/4 of physical, capped at 96 MiB.
    v7x (64 MiB/TC) -> 48 MiB; v5e/v6e (128 MiB) -> 96 MiB."""
    try:
        cap = int(pltpu.get_tpu_info().vmem_capacity_bytes)
    except Exception:
        cap = 64 << 20      # conservative fallback (v7x per-core VMEM)
    return int(min(cap * 3 // 4, 96 << 20))


def _pick_batch_tile(B, Trp, Tu, Dp, vmem_limit):
    """Largest Bt (dividing B) whose real VMEM footprint fits, while keeping
    enough grid steps for pipelining / megacore sharding."""
    # Bt-independent bytes: single-buffered bf16 weights + small f32 params.
    fixed = 2 * Dp * Dp * 2 + 6 * Dp * 4
    # Per-batch-element bytes:
    #   pipeline blocks (x2 double-buffered): Q + out (f32), K + V (bf16)
    blocks = 2 * (2 * Trp * Dp * 4) + 2 * (2 * Tu * Dp * 2)
    #   in-kernel intermediates: s, e, p (f32) + p bf16
    interm = Trp * Tu * (4 + 4 + 4 + 2)
    #   q32/qb, v_att, x(+bf16), h(+bf16), f, out  (per row of Trp)
    interm += Trp * Dp * (4 + 2 + 4 + 4 + 2 + 4 + 2 + 4 + 4)
    #   kb / vb values
    interm += Tu * Dp * (2 + 2)
    per_b = blocks + interm

    budget = max(vmem_limit - fixed - (4 << 20), per_b)   # compiler headroom
    bt_vmem = max(1, min(B, budget // per_b))

    # Keep >= 4 grid steps when possible (v7x has 2 TCs; also lets BlockSpec
    # double-buffering overlap DMA of step i+1 with compute of step i);
    # >= 2 steps otherwise.
    min_steps = 4 if B >= 4 else max(1, min(B, 2))
    bt_cap = max(1, B // min_steps)
    # If the FFN rows (Bt*Trp) badly underfill the 256-wide MXU, trade grid
    # steps (down to 2) for larger tiles.
    if bt_cap * Trp < 256 and B >= 2:
        bt_cap = max(bt_cap, min(B // 2, pl.cdiv(256, Trp)))

    bt = max(1, min(bt_vmem, bt_cap))
    while B % bt:
        bt -= 1
    return bt


def transformer_block(Q, K, V, params, *, is_layer_norm=False,
                      epsilon=1e-8, ln_eps=1e-5):
    """Pallas implementation of TransformerBlock.forward.

    Q: (B, Tr, D), K/V: (B, Tu, D); params from prepare_params().
    """
    B, Tr, D = Q.shape
    _, Tu, _ = K.shape
    assert params["d"] == D
    Dp = params["dp"]
    Trp = _round_up(Tr, 8)

    # Pad activations (lane-dense stores, free in-kernel reshapes); K/V are
    # streamed in bf16 to halve the dominant HBM bytes.
    Qp = _pad_to(Q.astype(jnp.float32), (B, Trp, Dp))
    Kp = _pad_to(K.astype(jnp.float32), (B, Tu, Dp)).astype(jnp.bfloat16)
    Vp = _pad_to(V.astype(jnp.float32), (B, Tu, Dp)).astype(jnp.bfloat16)

    vmem_limit = _vmem_limit_bytes()
    Bt = _pick_batch_tile(B, Trp, Tu, Dp, vmem_limit)

    dk = max(1.0, float(D))
    scale = 1.0 / (math.sqrt(dk) + float(epsilon))

    kernel = functools.partial(
        _transformer_block_kernel,
        is_layer_norm=is_layer_norm, scale=scale, ln_eps=ln_eps, d_real=D)

    flops = 4 * B * Trp * Tu * Dp + 4 * B * Trp * Dp * Dp
    bytes_accessed = (8 * B * Trp * Dp      # Q in + out (f32)
                      + 4 * B * Tu * Dp     # K + V (bf16)
                      + 4 * Dp * Dp         # bf16 weights
                      + 16 * Dp)            # biases + LN params

    def build(single_buffer_weights):
        if single_buffer_weights:
            # Constant index_map => the block never changes; one buffer is
            # enough.  Saves a second copy of each weight matrix in VMEM.
            def const_spec(shape):
                return pl.BlockSpec(shape, lambda b: (0, 0),
                                    pipeline_mode=pl.Buffered(1))
        else:
            def const_spec(shape):
                return pl.BlockSpec(shape, lambda b: (0, 0))

        grid_spec = pltpu.PrefetchScalarGridSpec(
            num_scalar_prefetch=0,
            grid=(B // Bt,),
            in_specs=[
                pl.BlockSpec((Bt, Trp, Dp), lambda b: (b, 0, 0)),   # Q (f32)
                pl.BlockSpec((Bt, Tu, Dp), lambda b: (b, 0, 0)),    # K (bf16)
                pl.BlockSpec((Bt, Tu, Dp), lambda b: (b, 0, 0)),    # V (bf16)
                const_spec((Dp, Dp)),                               # w1^T (bf16)
                const_spec((1, Dp)),                                # b1
                const_spec((Dp, Dp)),                               # w2^T (bf16)
                const_spec((1, Dp)),                                # b2
                const_spec((1, Dp)),                                # gamma
                const_spec((1, Dp)),                                # beta
            ],
            out_specs=pl.BlockSpec((Bt, Trp, Dp), lambda b: (b, 0, 0)),
        )
        return pl.pallas_call(
            kernel,
            out_shape=jax.ShapeDtypeStruct((B, Trp, Dp), jnp.float32),
            grid_spec=grid_spec,
            compiler_params=pltpu.CompilerParams(
                dimension_semantics=("parallel",),
                vmem_limit_bytes=vmem_limit),
            cost_estimate=pl.CostEstimate(
                flops=flops,
                transcendentals=B * Trp * Tu,
                bytes_accessed=bytes_accessed),
        )

    args = (Qp, Kp, Vp, params["w1t"], params["b1"], params["w2t"],
            params["b2"], params["gamma"], params["beta"])
    try:
        out = build(True)(*args)
    except Exception:
        # Fallback if single-buffered pipeline_mode is unavailable.
        out = build(False)(*args)

    return out[:, :Tr, :D]


def _reference(Q, K, V, w1, b1, w2, b2, gamma, beta,
               is_layer_norm=False, epsilon=1e-8):
    # Pure-JAX f32 reference mirroring the PyTorch forward.
    D = Q.shape[-1]
    dk = max(1.0, float(D))
    s = jnp.einsum('brd,bud->bru', Q, K) / (jnp.sqrt(dk) + epsilon)
    p = jax.nn.softmax(s, axis=-1)
    v_att = jnp.einsum('bru,bud->brd', p, V)

    def ln(x):
        mu = jnp.mean(x, -1, keepdims=True)
        var = jnp.mean((x - mu) ** 2, -1, keepdims=True)
        return (x - mu) / jnp.sqrt(var + 1e-5) * gamma + beta

    def ffn(x):
        h = jnp.maximum(x @ w1.T + b1, 0.0)
        return h @ w2.T + b2

    x = Q + v_att
    if is_layer_norm:
        x = ln(x)
        return ln(ffn(x) + x)
    return ffn(x) + x


if __name__ == "__main__":
    B, Tr, Tu, D = 2, 8, 8, 32  # batch, max_r_words, max_u_words, embedding_dim

    key = jax.random.PRNGKey(0)
    kq, kk, kv, kw1, kb1, kw2, kb2 = jax.random.split(key, 7)

    Q = jax.random.normal(kq, (B, Tr, D), jnp.float32)
    K = jax.random.normal(kk, (B, Tu, D), jnp.float32)
    V = jax.random.normal(kv, (B, Tu, D), jnp.float32)

    # Deterministic parameter init (xavier_normal_ for weights, small uniform
    # approximating the PyTorch Linear default for biases).
    xavier_std = (2.0 / (D + D)) ** 0.5
    w1 = jax.random.normal(kw1, (D, D), jnp.float32) * xavier_std
    w2 = jax.random.normal(kw2, (D, D), jnp.float32) * xavier_std
    bound = 1.0 / (D ** 0.5)
    b1 = jax.random.uniform(kb1, (D,), jnp.float32, -bound, bound)
    b2 = jax.random.uniform(kb2, (D,), jnp.float32, -bound, bound)
    gamma = jnp.ones((D,), jnp.float32)
    beta = jnp.zeros((D,), jnp.float32)

    params = prepare_params(w1, b1, w2, b2, gamma, beta)

    # bf16 MXU operands / bf16 K,V streaming (f32 accumulation) => compare
    # against the f32 reference with bf16-level tolerances.
    ATOL, RTOL = 5e-2, 5e-2

    out = jax.block_until_ready(
        transformer_block(Q, K, V, params, is_layer_norm=False))
    ref = _reference(Q, K, V, w1, b1, w2, b2, gamma, beta, is_layer_norm=False)
    assert out.shape == (B, Tr, D)
    assert jnp.allclose(out, ref, atol=ATOL, rtol=RTOL), "mismatch vs reference"

    # Also exercise the layer-norm variant of the kernel.
    out_ln = jax.block_until_ready(
        transformer_block(Q, K, V, params, is_layer_norm=True))
    ref_ln = _reference(Q, K, V, w1, b1, w2, b2, gamma, beta,
                        is_layer_norm=True)
    assert jnp.allclose(out_ln, ref_ln, atol=ATOL, rtol=RTOL), \
        "mismatch vs reference (layer-norm variant)"

    print("KERNEL_OK")
</pallas_src>

<mosaic_0001>
module attributes {stable_mosaic.version = 11 : i64} {
  func.func @_transformer_block_kernel(%arg0: i32, %arg1: memref<1x8x128xf32, #tpu.memory_space<vmem>>, %arg2: memref<1x8x128xbf16, #tpu.memory_space<vmem>>, %arg3: memref<1x8x128xbf16, #tpu.memory_space<vmem>>, %arg4: memref<128x128xbf16, #tpu.memory_space<vmem>>, %arg5: memref<1x128xf32, #tpu.memory_space<vmem>>, %arg6: memref<128x128xbf16, #tpu.memory_space<vmem>>, %arg7: memref<1x128xf32, #tpu.memory_space<vmem>>, %arg8: memref<1x128xf32, #tpu.memory_space<vmem>>, %arg9: memref<1x128xf32, #tpu.memory_space<vmem>>, %arg10: memref<1x8x128xf32, #tpu.memory_space<vmem>>) attributes {dimension_semantics = [#tpu.dimension_semantics<parallel>], iteration_bounds = array<i64: 2>, scalar_prefetch = 0 : i64, scratch_operands = 0 : i64, tpu.core_type = #tpu.core_type<tc>, window_params = [{transform_indices = @transform_0, window_bounds = array<i64: 1, 8, 128>}, {transform_indices = @transform_1, window_bounds = array<i64: 1, 8, 128>}, {transform_indices = @transform_2, window_bounds = array<i64: 1, 8, 128>}, {pipeline_mode = #tpu.pipeline_mode<synchronous>, transform_indices = @transform_3, window_bounds = array<i64: 128, 128>}, {pipeline_mode = #tpu.pipeline_mode<synchronous>, transform_indices = @transform_4, window_bounds = array<i64: 1, 128>}, {pipeline_mode = #tpu.pipeline_mode<synchronous>, transform_indices = @transform_5, window_bounds = array<i64: 128, 128>}, {pipeline_mode = #tpu.pipeline_mode<synchronous>, transform_indices = @transform_6, window_bounds = array<i64: 1, 128>}, {pipeline_mode = #tpu.pipeline_mode<synchronous>, transform_indices = @transform_7, window_bounds = array<i64: 1, 128>}, {pipeline_mode = #tpu.pipeline_mode<synchronous>, transform_indices = @transform_8, window_bounds = array<i64: 1, 128>}, {transform_indices = @transform_9, window_bounds = array<i64: 1, 8, 128>}]} {
    %c0 = arith.constant 0 : index
    %c0_0 = arith.constant 0 : index
    %c0_1 = arith.constant 0 : index
    %0 = vector.load %arg1[%c0, %c0_0, %c0_1] : memref<1x8x128xf32, #tpu.memory_space<vmem>>, vector<1x8x128xf32>
    %cst = arith.constant 0.176776692 : f32
    %1 = vector.broadcast %cst : f32 to vector<1x8x128xf32>
    %2 = arith.mulf %0, %1 : vector<1x8x128xf32>
    %3 = arith.truncf %2 : vector<1x8x128xf32> to vector<1x8x128xbf16>
    %c0_2 = arith.constant 0 : index
    %c0_3 = arith.constant 0 : index
    %c0_4 = arith.constant 0 : index
    %4 = vector.load %arg2[%c0_2, %c0_3, %c0_4] : memref<1x8x128xbf16, #tpu.memory_space<vmem>>, vector<1x8x128xbf16>
    %c0_5 = arith.constant 0 : index
    %c0_6 = arith.constant 0 : index
    %c0_7 = arith.constant 0 : index
    %5 = vector.load %arg3[%c0_5, %c0_6, %c0_7] : memref<1x8x128xbf16, #tpu.memory_space<vmem>>, vector<1x8x128xbf16>
    "tpu.trace_start"() <{level = 10 : i32, message = "brd,bud->bru"}> : () -> ()
    %cst_8 = arith.constant dense<0.000000e+00> : vector<1x8x8xf32>
    %6 = tpu.matmul %3, %4, %cst_8 {dimension_numbers = #tpu.dot_dimension_numbers<[2], [2], [1], [1], [0, 0, 0, 1, 1, 1], [0], [0]>} : vector<1x8x128xbf16>, vector<1x8x128xbf16>, vector<1x8x8xf32> -> vector<1x8x8xf32>
    "tpu.trace_stop"() : () -> ()
    %cst_9 = arith.constant dense<0xFF800000> : vector<1x8xf32>
    %7 = vector.multi_reduction <maximumf>, %6, %cst_9 [2] : vector<1x8x8xf32> to vector<1x8xf32>
    %8 = vector.shape_cast %7 : vector<1x8xf32> to vector<1x8x1xf32>
    %9 = vector.broadcast %8 : vector<1x8x1xf32> to vector<1x8x8xf32>
    %10 = arith.subf %6, %9 : vector<1x8x8xf32>
    %11 = math.exp %10 : vector<1x8x8xf32>
    %cst_10 = arith.constant dense<0.000000e+00> : vector<1x8xf32>
    %12 = vector.multi_reduction <add>, %11, %cst_10 [2] : vector<1x8x8xf32> to vector<1x8xf32>
    %13 = vector.shape_cast %12 : vector<1x8xf32> to vector<1x8x1xf32>
    %14 = tpu.reciprocal %13 {approx = true} : vector<1x8x1xf32> -> vector<1x8x1xf32>
    %15 = vector.broadcast %14 : vector<1x8x1xf32> to vector<1x8x8xf32>
    %16 = arith.mulf %11, %15 : vector<1x8x8xf32>
    %17 = arith.truncf %16 : vector<1x8x8xf32> to vector<1x8x8xbf16>
    "tpu.trace_start"() <{level = 10 : i32, message = "bru,bud->brd"}> : () -> ()
    %cst_11 = arith.constant dense<0.000000e+00> : vector<1x8x128xf32>
    %18 = tpu.matmul %17, %5, %cst_11 {dimension_numbers = #tpu.dot_dimension_numbers<[2], [1], [1], [2], [0, 0, 0, 1, 1, 2], [0], [0]>} : vector<1x8x8xbf16>, vector<1x8x128xbf16>, vector<1x8x128xf32> -> vector<1x8x128xf32>
    "tpu.trace_stop"() : () -> ()
    %19 = arith.addf %0, %18 : vector<1x8x128xf32>
    %20 = vector.shape_cast %19 : vector<1x8x128xf32> to vector<8x128xf32>
    %21 = arith.truncf %20 : vector<8x128xf32> to vector<8x128xbf16>
    %c0_12 = arith.constant 0 : index
    %c0_13 = arith.constant 0 : index
    %22 = vector.load %arg4[%c0_12, %c0_13] : memref<128x128xbf16, #tpu.memory_space<vmem>>, vector<128x128xbf16>
    %cst_14 = arith.constant dense<0.000000e+00> : vector<8x128xf32>
    %23 = tpu.matmul %21, %22, %cst_14 {dimension_numbers = #tpu.dot_dimension_numbers<[1], [0], [0], [1], [0, 0, 1, 1], [], []>} : vector<8x128xbf16>, vector<128x128xbf16>, vector<8x128xf32> -> vector<8x128xf32>
    %c0_15 = arith.constant 0 : index
    %c0_16 = arith.constant 0 : index
    %24 = vector.load %arg5[%c0_15, %c0_16] : memref<1x128xf32, #tpu.memory_space<vmem>>, vector<1x128xf32>
    %25 = vector.broadcast %24 : vector<1x128xf32> to vector<8x128xf32>
    %26 = arith.addf %23, %25 : vector<8x128xf32>
    %cst_17 = arith.constant 0.000000e+00 : f32
    %27 = vector.broadcast %cst_17 : f32 to vector<8x128xf32>
    %28 = arith.maximumf %26, %27 : vector<8x128xf32>
    %29 = arith.truncf %28 : vector<8x128xf32> to vector<8x128xbf16>
    %c0_18 = arith.constant 0 : index
    %c0_19 = arith.constant 0 : index
    %30 = vector.load %arg6[%c0_18, %c0_19] : memref<128x128xbf16, #tpu.memory_space<vmem>>, vector<128x128xbf16>
    %cst_20 = arith.constant dense<0.000000e+00> : vector<8x128xf32>
    %31 = tpu.matmul %29, %30, %cst_20 {dimension_numbers = #tpu.dot_dimension_numbers<[1], [0], [0], [1], [0, 0, 1, 1], [], []>} : vector<8x128xbf16>, vector<128x128xbf16>, vector<8x128xf32> -> vector<8x128xf32>
    %c0_21 = arith.constant 0 : index
    %c0_22 = arith.constant 0 : index
    %32 = vector.load %arg7[%c0_21, %c0_22] : memref<1x128xf32, #tpu.memory_space<vmem>>, vector<1x128xf32>
    %33 = vector.broadcast %32 : vector<1x128xf32> to vector<8x128xf32>
    %34 = arith.addf %31, %33 : vector<8x128xf32>
    %35 = arith.addf %34, %20 : vector<8x128xf32>
    %36 = vector.shape_cast %35 : vector<8x128xf32> to vector<1x8x128xf32>
    %c0_23 = arith.constant 0 : index
    %c0_24 = arith.constant 0 : index
    %c0_25 = arith.constant 0 : index
    %37 = vector.load %arg10[%c0_23, %c0_24, %c0_25] : memref<1x8x128xf32, #tpu.memory_space<vmem>>, vector<1x8x128xf32>
    tpu.vector_store %arg10[%c0_23, %c0_24, %c0_25], %36 {strides = array<i32>} : memref<1x8x128xf32, #tpu.memory_space<vmem>>, vector<1x8x128xf32>,
    return
  }
  func.func @transform_0(%arg0: i32) -> (i32, i32, i32) {
    %c0_i32 = arith.constant 0 : i32
    %c0_i32_0 = arith.constant 0 : i32
    %c0_i32_1 = arith.constant 0 : i32
    return %arg0, %c0_i32, %c0_i32_0 : i32, i32, i32
  }
  func.func @transform_1(%arg0: i32) -> (i32, i32, i32) {
    %c0_i32 = arith.constant 0 : i32
    %c0_i32_0 = arith.constant 0 : i32
    %c0_i32_1 = arith.constant 0 : i32
    return %arg0, %c0_i32, %c0_i32_0 : i32, i32, i32
  }
  func.func @transform_2(%arg0: i32) -> (i32, i32, i32) {
    %c0_i32 = arith.constant 0 : i32
    %c0_i32_0 = arith.constant 0 : i32
    %c0_i32_1 = arith.constant 0 : i32
    return %arg0, %c0_i32, %c0_i32_0 : i32, i32, i32
  }
  func.func @transform_3(%arg0: i32) -> (i32, i32) {
    %c0_i32 = arith.constant 0 : i32
    %c0_i32_0 = arith.constant 0 : i32
    %c0_i32_1 = arith.constant 0 : i32
    return %c0_i32, %c0_i32_0 : i32, i32
  }
  func.func @transform_4(%arg0: i32) -> (i32, i32) {
    %c0_i32 = arith.constant 0 : i32
    %c0_i32_0 = arith.constant 0 : i32
    %c0_i32_1 = arith.constant 0 : i32
    return %c0_i32, %c0_i32_0 : i32, i32
  }
  func.func @transform_5(%arg0: i32) -> (i32, i32) {
    %c0_i32 = arith.constant 0 : i32
    %c0_i32_0 = arith.constant 0 : i32
    %c0_i32_1 = arith.constant 0 : i32
    return %c0_i32, %c0_i32_0 : i32, i32
  }
  func.func @transform_6(%arg0: i32) -> (i32, i32) {
    %c0_i32 = arith.constant 0 : i32
    %c0_i32_0 = arith.constant 0 : i32
    %c0_i32_1 = arith.constant 0 : i32
    return %c0_i32, %c0_i32_0 : i32, i32
  }
  func.func @transform_7(%arg0: i32) -> (i32, i32) {
    %c0_i32 = arith.constant 0 : i32
    %c0_i32_0 = arith.constant 0 : i32
    %c0_i32_1 = arith.constant 0 : i32
    return %c0_i32, %c0_i32_0 : i32, i32
  }
  func.func @transform_8(%arg0: i32) -> (i32, i32) {
    %c0_i32 = arith.constant 0 : i32
    %c0_i32_0 = arith.constant 0 : i32
    %c0_i32_1 = arith.constant 0 : i32
    return %c0_i32, %c0_i32_0 : i32, i32
  }
  func.func @transform_9(%arg0: i32) -> (i32, i32, i32) {
    %c0_i32 = arith.constant 0 : i32
    %c0_i32_0 = arith.constant 0 : i32
    %c0_i32_1 = arith.constant 0 : i32
    return %arg0, %c0_i32, %c0_i32_0 : i32, i32, i32
  }
}

module attributes {stable_mosaic.version = 11 : i64} {
  func.func @_transformer_block_kernel(%arg0: i32, %arg1: memref<1x8x128xf32, #tpu.memory_space<vmem>>, %arg2: memref<1x8x128xbf16, #tpu.memory_space<vmem>>, %arg3: memref<1x8x128xbf16, #tpu.memory_space<vmem>>, %arg4: memref<128x128xbf16, #tpu.memory_space<vmem>>, %arg5: memref<1x128xf32, #tpu.memory_space<vmem>>, %arg6: memref<128x128xbf16, #tpu.memory_space<vmem>>, %arg7: memref<1x128xf32, #tpu.memory_space<vmem>>, %arg8: memref<1x128xf32, #tpu.memory_space<vmem>>, %arg9: memref<1x128xf32, #tpu.memory_space<vmem>>, %arg10: memref<1x8x128xf32, #tpu.memory_space<vmem>>) attributes {dimension_semantics = [#tpu.dimension_semantics<parallel>], iteration_bounds = array<i64: 2>, scalar_prefetch = 0 : i64, scratch_operands = 0 : i64, tpu.core_type = #tpu.core_type<tc>, window_params = [{transform_indices = @transform_0, window_bounds = array<i64: 1, 8, 128>}, {transform_indices = @transform_1, window_bounds = array<i64: 1, 8, 128>}, {transform_indices = @transform_2, window_bounds = array<i64: 1, 8, 128>}, {pipeline_mode = #tpu.pipeline_mode<synchronous>, transform_indices = @transform_3, window_bounds = array<i64: 128, 128>}, {pipeline_mode = #tpu.pipeline_mode<synchronous>, transform_indices = @transform_4, window_bounds = array<i64: 1, 128>}, {pipeline_mode = #tpu.pipeline_mode<synchronous>, transform_indices = @transform_5, window_bounds = array<i64: 128, 128>}, {pipeline_mode = #tpu.pipeline_mode<synchronous>, transform_indices = @transform_6, window_bounds = array<i64: 1, 128>}, {pipeline_mode = #tpu.pipeline_mode<synchronous>, transform_indices = @transform_7, window_bounds = array<i64: 1, 128>}, {pipeline_mode = #tpu.pipeline_mode<synchronous>, transform_indices = @transform_8, window_bounds = array<i64: 1, 128>}, {transform_indices = @transform_9, window_bounds = array<i64: 1, 8, 128>}]} {
    %c0 = arith.constant 0 : index
    %c0_0 = arith.constant 0 : index
    %c0_1 = arith.constant 0 : index
    %0 = vector.load %arg1[%c0, %c0_0, %c0_1] : memref<1x8x128xf32, #tpu.memory_space<vmem>>, vector<1x8x128xf32>
    %cst = arith.constant 0.176776692 : f32
    %1 = vector.broadcast %cst : f32 to vector<1x8x128xf32>
    %2 = arith.mulf %0, %1 : vector<1x8x128xf32>
    %3 = arith.truncf %2 : vector<1x8x128xf32> to vector<1x8x128xbf16>
    %c0_2 = arith.constant 0 : index
    %c0_3 = arith.constant 0 : index
    %c0_4 = arith.constant 0 : index
    %4 = vector.load %arg2[%c0_2, %c0_3, %c0_4] : memref<1x8x128xbf16, #tpu.memory_space<vmem>>, vector<1x8x128xbf16>
    %c0_5 = arith.constant 0 : index
    %c0_6 = arith.constant 0 : index
    %c0_7 = arith.constant 0 : index
    %5 = vector.load %arg3[%c0_5, %c0_6, %c0_7] : memref<1x8x128xbf16, #tpu.memory_space<vmem>>, vector<1x8x128xbf16>
    "tpu.trace_start"() <{level = 10 : i32, message = "brd,bud->bru"}> : () -> ()
    %cst_8 = arith.constant dense<0.000000e+00> : vector<1x8x8xf32>
    %6 = tpu.matmul %3, %4, %cst_8 {dimension_numbers = #tpu.dot_dimension_numbers<[2], [2], [1], [1], [0, 0, 0, 1, 1, 1], [0], [0]>} : vector<1x8x128xbf16>, vector<1x8x128xbf16>, vector<1x8x8xf32> -> vector<1x8x8xf32>
    "tpu.trace_stop"() : () -> ()
    %cst_9 = arith.constant dense<0xFF800000> : vector<1x8xf32>
    %7 = vector.multi_reduction <maximumf>, %6, %cst_9 [2] : vector<1x8x8xf32> to vector<1x8xf32>
    %8 = vector.shape_cast %7 : vector<1x8xf32> to vector<1x8x1xf32>
    %9 = vector.broadcast %8 : vector<1x8x1xf32> to vector<1x8x8xf32>
    %10 = arith.subf %6, %9 : vector<1x8x8xf32>
    %11 = math.exp %10 : vector<1x8x8xf32>
    %cst_10 = arith.constant dense<0.000000e+00> : vector<1x8xf32>
    %12 = vector.multi_reduction <add>, %11, %cst_10 [2] : vector<1x8x8xf32> to vector<1x8xf32>
    %13 = vector.shape_cast %12 : vector<1x8xf32> to vector<1x8x1xf32>
    %14 = tpu.reciprocal %13 {approx = true} : vector<1x8x1xf32> -> vector<1x8x1xf32>
    %15 = vector.broadcast %14 : vector<1x8x1xf32> to vector<1x8x8xf32>
    %16 = arith.mulf %11, %15 : vector<1x8x8xf32>
    %17 = arith.truncf %16 : vector<1x8x8xf32> to vector<1x8x8xbf16>
    "tpu.trace_start"() <{level = 10 : i32, message = "bru,bud->brd"}> : () -> ()
    %cst_11 = arith.constant dense<0.000000e+00> : vector<1x8x128xf32>
    %18 = tpu.matmul %17, %5, %cst_11 {dimension_numbers = #tpu.dot_dimension_numbers<[2], [1], [1], [2], [0, 0, 0, 1, 1, 2], [0], [0]>} : vector<1x8x8xbf16>, vector<1x8x128xbf16>, vector<1x8x128xf32> -> vector<1x8x128xf32>
    "tpu.trace_stop"() : () -> ()
    %19 = arith.addf %0, %18 : vector<1x8x128xf32>
    %20 = vector.shape_cast %19 : vector<1x8x128xf32> to vector<8x128xf32>
    %21 = arith.truncf %20 : vector<8x128xf32> to vector<8x128xbf16>
    %c0_12 = arith.constant 0 : index
    %c0_13 = arith.constant 0 : index
    %22 = vector.load %arg4[%c0_12, %c0_13] : memref<128x128xbf16, #tpu.memory_space<vmem>>, vector<128x128xbf16>
    %cst_14 = arith.constant dense<0.000000e+00> : vector<8x128xf32>
    %23 = tpu.matmul %21, %22, %cst_14 {dimension_numbers = #tpu.dot_dimension_numbers<[1], [0], [0], [1], [0, 0, 1, 1], [], []>} : vector<8x128xbf16>, vector<128x128xbf16>, vector<8x128xf32> -> vector<8x128xf32>
    %c0_15 = arith.constant 0 : index
    %c0_16 = arith.constant 0 : index
    %24 = vector.load %arg5[%c0_15, %c0_16] : memref<1x128xf32, #tpu.memory_space<vmem>>, vector<1x128xf32>
    %25 = vector.broadcast %24 : vector<1x128xf32> to vector<8x128xf32>
    %26 = arith.addf %23, %25 : vector<8x128xf32>
    %cst_17 = arith.constant 0.000000e+00 : f32
    %27 = vector.broadcast %cst_17 : f32 to vector<8x128xf32>
    %28 = arith.maximumf %26, %27 : vector<8x128xf32>
    %29 = arith.truncf %28 : vector<8x128xf32> to vector<8x128xbf16>
    %c0_18 = arith.constant 0 : index
    %c0_19 = arith.constant 0 : index
    %30 = vector.load %arg6[%c0_18, %c0_19] : memref<128x128xbf16, #tpu.memory_space<vmem>>, vector<128x128xbf16>
    %cst_20 = arith.constant dense<0.000000e+00> : vector<8x128xf32>
    %31 = tpu.matmul %29, %30, %cst_20 {dimension_numbers = #tpu.dot_dimension_numbers<[1], [0], [0], [1], [0, 0, 1, 1], [], []>} : vector<8x128xbf16>, vector<128x128xbf16>, vector<8x128xf32> -> vector<8x128xf32>
    %c0_21 = arith.constant 0 : index
    %c0_22 = arith.constant 0 : index
    %32 = vector.load %arg7[%c0_21, %c0_22] : memref<1x128xf32, #tpu.memory_space<vmem>>, vector<1x128xf32>
    %33 = vector.broadcast %32 : vector<1x128xf32> to vector<8x128xf32>
    %34 = arith.addf %31, %33 : vector<8x128xf32>
    %35 = arith.addf %34, %20 : vector<8x128xf32>
    %36 = vector.shape_cast %35 : vector<8x128xf32> to vector<1x8x128xf32>
    %c0_23 = arith.constant 0 : index
    %c0_24 = arith.constant 0 : index
    %c0_25 = arith.constant 0 : index
    %37 = vector.load %arg10[%c0_23, %c0_24, %c0_25] : memref<1x8x128xf32, #tpu.memory_space<vmem>>, vector<1x8x128xf32>
    tpu.vector_store %arg10[%c0_23, %c0_24, %c0_25], %36 {strides = array<i32>} : memref<1x8x128xf32, #tpu.memory_space<vmem>>, vector<1x8x128xf32>,
    return
  }
  func.func @transform_0(%arg0: i32) -> (i32, i32, i32) {
    %c0_i32 = arith.constant 0 : i32
    %c0_i32_0 = arith.constant 0 : i32
    %c0_i32_1 = arith.constant 0 : i32
    return %arg0, %c0_i32, %c0_i32_0 : i32, i32, i32
  }
  func.func @transform_1(%arg0: i32) -> (i32, i32, i32) {
    %c0_i32 = arith.constant 0 : i32
    %c0_i32_0 = arith.constant 0 : i32
    %c0_i32_1 = arith.constant 0 : i32
    return %arg0, %c0_i32, %c0_i32_0 : i32, i32, i32
  }
  func.func @transform_2(%arg0: i32) -> (i32, i32, i32) {
    %c0_i32 = arith.constant 0 : i32
    %c0_i32_0 = arith.constant 0 : i32
    %c0_i32_1 = arith.constant 0 : i32
    return %arg0, %c0_i32, %c0_i32_0 : i32, i32, i32
  }
  func.func @transform_3(%arg0: i32) -> (i32, i32) {
    %c0_i32 = arith.constant 0 : i32
    %c0_i32_0 = arith.constant 0 : i32
    %c0_i32_1 = arith.constant 0 : i32
    return %c0_i32, %c0_i32_0 : i32, i32
  }
  func.func @transform_4(%arg0: i32) -> (i32, i32) {
    %c0_i32 = arith.constant 0 : i32
    %c0_i32_0 = arith.constant 0 : i32
    %c0_i32_1 = arith.constant 0 : i32
    return %c0_i32, %c0_i32_0 : i32, i32
  }
  func.func @transform_5(%arg0: i32) -> (i32, i32) {
    %c0_i32 = arith.constant 0 : i32
    %c0_i32_0 = arith.constant 0 : i32
    %c0_i32_1 = arith.constant 0 : i32
    return %c0_i32, %c0_i32_0 : i32, i32
  }
  func.func @transform_6(%arg0: i32) -> (i32, i32) {
    %c0_i32 = arith.constant 0 : i32
    %c0_i32_0 = arith.constant 0 : i32
    %c0_i32_1 = arith.constant 0 : i32
    return %c0_i32, %c0_i32_0 : i32, i32
  }
  func.func @transform_7(%arg0: i32) -> (i32, i32) {
    %c0_i32 = arith.constant 0 : i32
    %c0_i32_0 = arith.constant 0 : i32
    %c0_i32_1 = arith.constant 0 : i32
    return %c0_i32, %c0_i32_0 : i32, i32
  }
  func.func @transform_8(%arg0: i32) -> (i32, i32) {
    %c0_i32 = arith.constant 0 : i32
    %c0_i32_0 = arith.constant 0 : i32
    %c0_i32_1 = arith.constant 0 : i32
    return %c0_i32, %c0_i32_0 : i32, i32
  }
  func.func @transform_9(%arg0: i32) -> (i32, i32, i32) {
    %c0_i32 = arith.constant 0 : i32
    %c0_i32_0 = arith.constant 0 : i32
    %c0_i32_1 = arith.constant 0 : i32
    return %arg0, %c0_i32, %c0_i32_0 : i32, i32, i32
  }
}

</mosaic_0001>

<llo_original>
// kernel: tpu_custom_call.1
$region0: #{tpu_custom_call.1}
  #allocation0 [shape = 'u32[]', space=smem, size = 0x4, offset = 0x4, fixed_abs, tag = 'smem constant byte address 0x4 - core index']
  #allocation1 [shape = 'u32[144,128]{1,0:T(1,128)}', space=vmem, size = 0x12000, scoped, tag = 'internal scratch']
  %s0 = inlined_call_operand.hbm [shape: f32[2,8,128], index: 0, kind: input, shape index: {}]
  %s1 = inlined_call_operand.hbm [shape: bf16[2,8,128], index: 1, kind: input, shape index: {}]
  %s2 = inlined_call_operand.hbm [shape: bf16[2,8,128], index: 2, kind: input, shape index: {}]
  %s3 = inlined_call_operand.hbm [shape: bf16[128,128], index: 3, kind: input, shape index: {}]
  %s4 = inlined_call_operand.vmem [shape: f32[1,128], index: 4, kind: input, shape index: {}]
  %s5 = inlined_call_operand.hbm [shape: bf16[128,128], index: 5, kind: input, shape index: {}]
  %s6 = inlined_call_operand.vmem [shape: f32[1,128], index: 6, kind: input, shape index: {}]
  %s7 = inlined_call_operand.vmem [shape: f32[1,128], index: 7, kind: input, shape index: {}]
  %s8 = inlined_call_operand.vmem [shape: f32[1,128], index: 8, kind: input, shape index: {}]
  %s9 = inlined_call_operand.hbm [shape: f32[2,8,128], index: 9, kind: output, shape index: {}]
  %s10 = sld [smem:[#allocation0]]
  $region89: #{tpu_custom_call.1} parent=0
    _
  %s12 = ssub.s32 1, %s10
  %s13 = scalar_select 0, %s12, %s10
  $region1: #{tpu_custom_call.1} parent=0
    #allocation2 [shape = 'u8[8192]{0}', space=vmem, size = 0x2000, scoped, tag = 'input window, operand 0']
    #allocation3 [shape = 's32[2]{0}', space=sflag, size = 0x8, scoped, tag = 'scoped memory for tpu_custom_call.1']
    #allocation4 [shape = 's32[2]{0}', space=sflag, size = 0x8, scoped, tag = 'scoped memory for tpu_custom_call.1']
    #allocation5 [shape = 'u8[4096]{0}', space=vmem, size = 0x1000, scoped, tag = 'input window, operand 1']
    #allocation6 [shape = 's32[2]{0}', space=sflag, size = 0x8, scoped, tag = 'scoped memory for tpu_custom_call.1']
    #allocation7 [shape = 'u8[4096]{0}', space=vmem, size = 0x1000, scoped, tag = 'input window, operand 2']
    #allocation8 [shape = 'u8[32768]{0}', space=vmem, size = 0x8000, scoped, tag = 'input window, operand 3, single buffered']
    #allocation9 [shape = 's32[1]{0}', space=sflag, size = 0x4, scoped, tag = 'scoped memory for tpu_custom_call.1']
    #allocation10 [shape = 'u8[32768]{0}', space=vmem, size = 0x8000, scoped, tag = 'input window, operand 5, single buffered']
    #allocation11 [shape = 'u8[8192]{0}', space=vmem, size = 0x2000, scoped, tag = 'output window, operand 0']
    %14 = vsyncpa [#allocation3], 0
    %s15 = scalar_lea.sflag [#allocation3], 1
    %16 = vsyncpa %s15, 0
    %17 = vsyncpa [#allocation6], 0
    %s18 = scalar_lea.sflag [#allocation6], 1
    %19 = vsyncpa %s18, 0
    %20 = vsyncpa [#allocation9], 0
    %21 = vsyncpa [#allocation4], 0
    %s22 = scalar_lea.sflag [#allocation4], 1
    %23 = vsyncpa %s22, 0
    loop: start=0, step=1, limit=4
    $region2: #{tpu_custom_call.1} parent=1 // loop_pre_header
      _
    $region3: #{tpu_custom_call.1} parent=1 // loop_header
      %s25 = sphi 0, %s29
      %p26 = scmp.ge.s32.totalorder %s25, 4
      %s35 = sphi 0, %s37
      %s38 = sphi 0, %s35
      %s39 = sphi 0, %s38
      %s55 = sphi 0, %s39
      %s61 = sphi 0, %s63
      %s64 = sphi 0, %s61
      %s65 = sphi 0, %s64
      %s81 = sphi 0, %s65
      %s87 = sphi 0, %s89
      %s90 = sphi 0, %s87
      %s91 = sphi 0, %s90
      %s107 = sphi 0, %s91
      %s111 = sphi 0, %s111
      %s113 = sphi 0, %s111
      %s114 = sphi 0, %s113
      %s128 = sphi 0, %s114
      %s132 = sphi 0, %s132
      %s134 = sphi 0, %s132
      %s135 = sphi 0, %s134
      %s149 = sphi 0, %s135
      %s153 = sphi 0, %s153
      %s155 = sphi 0, %s153
      %s156 = sphi 0, %s155
      %s170 = sphi 0, %s156
      %s174 = sphi 0, %s174
      %s176 = sphi 0, %s174
      %s177 = sphi 0, %s176
      %s191 = sphi 0, %s177
      %s195 = sphi 0, %s195
      %s197 = sphi 0, %s195
      %s198 = sphi 0, %s197
      %s212 = sphi 0, %s198
      %s216 = sphi 0, %s216
      %s218 = sphi 0, %s216
      %s219 = sphi 0, %s218
      %s233 = sphi 0, %s219
      %s239 = sphi 0, %s241
      %s242 = sphi 0, %s239
      %s243 = sphi 0, %s242
      %s259 = sphi 0, %s243
    $region4: #{tpu_custom_call.1} parent=1 // loop_header_branch
      %28 = sbr.rel (%p26) target = $region8
    $region5: #{tpu_custom_call.1} parent=1 // loop_body
      %s30 = ssub.s32 %s25, 1
      %s31 = ssub.s32 %s25, 2
      %s32 = sadd.s32 %s25, 1
      %s33 = ssub.s32 %s25, %s32
      %p34 = scmp.eq.s32.totalorder %s33, 0
      %s36 = sadd.s32 %s35, 1
      %s37 = scalar_select %p34, %s35, %s36
      %p40 = pneg %p34
      %p41 = scmp.eq.s32.totalorder %s25, 1
      %p42 = por %p40, %p41
      %p43 = scmp.ne.s32.totalorder %s35, %s38
      %p44 = scmp.eq.s32.totalorder %s25, 0
      %p45 = por %p43, %p44
      %p46 = scmp.ne.s32.totalorder %s35, %s38
      %p47 = scmp.eq.s32.totalorder %s30, 1
      %p48 = por %p46, %p47
      %p49 = scmp.ne.s32.totalorder %s38, %s39
      %p50 = scmp.eq.s32.totalorder %s30, 0
      %p51 = por %p49, %p50
      %p52 = scmp.ne.s32.totalorder %s38, %s39
      %p53 = scmp.eq.s32.totalorder %s31, 1
      %p54 = por %p52, %p53
      %p56 = scmp.ne.s32.totalorder %s39, %s55
      %p57 = scmp.eq.s32.totalorder %s31, 0
      %p58 = por %p56, %p57
      %s59 = ssub.s32 %s25, %s32
      %p60 = scmp.eq.s32.totalorder %s59, 0
      %s62 = sadd.s32 %s61, 1
      %s63 = scalar_select %p60, %s61, %s62
      %p66 = pneg %p60
      %p67 = scmp.eq.s32.totalorder %s25, 1
      %p68 = por %p66, %p67
      %p69 = scmp.ne.s32.totalorder %s61, %s64
      %p70 = scmp.eq.s32.totalorder %s25, 0
      %p71 = por %p69, %p70
      %p72 = scmp.ne.s32.totalorder %s61, %s64
      %p73 = scmp.eq.s32.totalorder %s30, 1
      %p74 = por %p72, %p73
      %p75 = scmp.ne.s32.totalorder %s64, %s65
      %p76 = scmp.eq.s32.totalorder %s30, 0
      %p77 = por %p75, %p76
      %p78 = scmp.ne.s32.totalorder %s64, %s65
      %p79 = scmp.eq.s32.totalorder %s31, 1
      %p80 = por %p78, %p79
      %p82 = scmp.ne.s32.totalorder %s65, %s81
      %p83 = scmp.eq.s32.totalorder %s31, 0
      %p84 = por %p82, %p83
      %s85 = ssub.s32 %s25, %s32
      %p86 = scmp.eq.s32.totalorder %s85, 0
      %s88 = sadd.s32 %s87, 1
      %s89 = scalar_select %p86, %s87, %s88
      %p92 = pneg %p86
      %p93 = scmp.eq.s32.totalorder %s25, 1
      %p94 = por %p92, %p93
      %p95 = scmp.ne.s32.totalorder %s87, %s90
      %p96 = scmp.eq.s32.totalorder %s25, 0
      %p97 = por %p95, %p96
      %p98 = scmp.ne.s32.totalorder %s87, %s90
      %p99 = scmp.eq.s32.totalorder %s30, 1
      %p100 = por %p98, %p99
      %p101 = scmp.ne.s32.totalorder %s90, %s91
      %p102 = scmp.eq.s32.totalorder %s30, 0
      %p103 = por %p101, %p102
      %p104 = scmp.ne.s32.totalorder %s90, %s91
      %p105 = scmp.eq.s32.totalorder %s31, 1
      %p106 = por %p104, %p105
      %p108 = scmp.ne.s32.totalorder %s91, %s107
      %p109 = scmp.eq.s32.totalorder %s31, 0
      %p110 = por %p108, %p109
      %s112 = sadd.s32 %s111, 1
      %p115 = scmp.eq.s32.totalorder %s25, 1
      %p116 = scmp.ne.s32.totalorder %s111, %s113
      %p117 = scmp.eq.s32.totalorder %s25, 0
      %p118 = por %p116, %p117
      %p119 = scmp.ne.s32.totalorder %s111, %s113
      %p120 = scmp.eq.s32.totalorder %s30, 1
      %p121 = por %p119, %p120
      %p122 = scmp.ne.s32.totalorder %s113, %s114
      %p123 = scmp.eq.s32.totalorder %s30, 0
      %p124 = por %p122, %p123
      %p125 = scmp.ne.s32.totalorder %s113, %s114
      %p126 = scmp.eq.s32.totalorder %s31, 1
      %p127 = por %p125, %p126
      %p129 = scmp.ne.s32.totalorder %s114, %s128
      %p130 = scmp.eq.s32.totalorder %s31, 0
      %p131 = por %p129, %p130
      %s133 = sadd.s32 %s132, 1
      %p136 = scmp.eq.s32.totalorder %s25, 1
      %p137 = scmp.ne.s32.totalorder %s132, %s134
      %p138 = scmp.eq.s32.totalorder %s25, 0
      %p139 = por %p137, %p138
      %p140 = scmp.ne.s32.totalorder %s132, %s134
      %p141 = scmp.eq.s32.totalorder %s30, 1
      %p142 = por %p140, %p141
      %p143 = scmp.ne.s32.totalorder %s134, %s135
      %p144 = scmp.eq.s32.totalorder %s30, 0
      %p145 = por %p143, %p144
      %p146 = scmp.ne.s32.totalorder %s134, %s135
      %p147 = scmp.eq.s32.totalorder %s31, 1
      %p148 = por %p146, %p147
      %p150 = scmp.ne.s32.totalorder %s135, %s149
      %p151 = scmp.eq.s32.totalorder %s31, 0
      %p152 = por %p150, %p151
      %s154 = sadd.s32 %s153, 1
      %p157 = scmp.eq.s32.totalorder %s25, 1
      %p158 = scmp.ne.s32.totalorder %s153, %s155
      %p159 = scmp.eq.s32.totalorder %s25, 0
      %p160 = por %p158, %p159
      %p161 = scmp.ne.s32.totalorder %s153, %s155
      %p162 = scmp.eq.s32.totalorder %s30, 1
      %p163 = por %p161, %p162
      %p164 = scmp.ne.s32.totalorder %s155, %s156
      %p165 = scmp.eq.s32.totalorder %s30, 0
      %p166 = por %p164, %p165
      %p167 = scmp.ne.s32.totalorder %s155, %s156
      %p168 = scmp.eq.s32.totalorder %s31, 1
      %p169 = por %p167, %p168
      %p171 = scmp.ne.s32.totalorder %s156, %s170
      %p172 = scmp.eq.s32.totalorder %s31, 0
      %p173 = por %p171, %p172
      %s175 = sadd.s32 %s174, 1
      %p178 = scmp.eq.s32.totalorder %s25, 1
      %p179 = scmp.ne.s32.totalorder %s174, %s176
      %p180 = scmp.eq.s32.totalorder %s25, 0
      %p181 = por %p179, %p180
      %p182 = scmp.ne.s32.totalorder %s174, %s176
      %p183 = scmp.eq.s32.totalorder %s30, 1
      %p184 = por %p182, %p183
      %p185 = scmp.ne.s32.totalorder %s176, %s177
      %p186 = scmp.eq.s32.totalorder %s30, 0
      %p187 = por %p185, %p186
      %p188 = scmp.ne.s32.totalorder %s176, %s177
      %p189 = scmp.eq.s32.totalorder %s31, 1
      %p190 = por %p188, %p189
      %p192 = scmp.ne.s32.totalorder %s177, %s191
      %p193 = scmp.eq.s32.totalorder %s31, 0
      %p194 = por %p192, %p193
      %s196 = sadd.s32 %s195, 1
      %p199 = scmp.eq.s32.totalorder %s25, 1
      %p200 = scmp.ne.s32.totalorder %s195, %s197
      %p201 = scmp.eq.s32.totalorder %s25, 0
      %p202 = por %p200, %p201
      %p203 = scmp.ne.s32.totalorder %s195, %s197
      %p204 = scmp.eq.s32.totalorder %s30, 1
      %p205 = por %p203, %p204
      %p206 = scmp.ne.s32.totalorder %s197, %s198
      %p207 = scmp.eq.s32.totalorder %s30, 0
      %p208 = por %p206, %p207
      %p209 = scmp.ne.s32.totalorder %s197, %s198
      %p210 = scmp.eq.s32.totalorder %s31, 1
      %p211 = por %p209, %p210
      %p213 = scmp.ne.s32.totalorder %s198, %s212
      %p214 = scmp.eq.s32.totalorder %s31, 0
      %p215 = por %p213, %p214
      %s217 = sadd.s32 %s216, 1
      %p220 = scmp.eq.s32.totalorder %s25, 1
      %p221 = scmp.ne.s32.totalorder %s216, %s218
      %p222 = scmp.eq.s32.totalorder %s25, 0
      %p223 = por %p221, %p222
      %p224 = scmp.ne.s32.totalorder %s216, %s218
      %p225 = scmp.eq.s32.totalorder %s30, 1
      %p226 = por %p224, %p225
      %p227 = scmp.ne.s32.totalorder %s218, %s219
      %p228 = scmp.eq.s32.totalorder %s30, 0
      %p229 = por %p227, %p228
      %p230 = scmp.ne.s32.totalorder %s218, %s219
      %p231 = scmp.eq.s32.totalorder %s31, 1
      %p232 = por %p230, %p231
      %p234 = scmp.ne.s32.totalorder %s219, %s233
      %p235 = scmp.eq.s32.totalorder %s31, 0
      %p236 = por %p234, %p235
      %s237 = ssub.s32 %s25, %s32
      %p238 = scmp.eq.s32.totalorder %s237, 0
      %s240 = sadd.s32 %s239, 1
      %s241 = scalar_select %p238, %s239, %s240
      %p244 = pneg %p238
      %p245 = scmp.eq.s32.totalorder %s25, 1
      %p246 = por %p244, %p245
      %p247 = scmp.ne.s32.totalorder %s239, %s242
      %p248 = scmp.eq.s32.totalorder %s25, 0
      %p249 = por %p247, %p248
      %p250 = scmp.ne.s32.totalorder %s239, %s242
      %p251 = scmp.eq.s32.totalorder %s30, 1
      %p252 = por %p250, %p251
      %p253 = scmp.ne.s32.totalorder %s242, %s243
      %p254 = scmp.eq.s32.totalorder %s30, 0
      %p255 = por %p253, %p254
      %p256 = scmp.ne.s32.totalorder %s242, %s243
      %p257 = scmp.eq.s32.totalorder %s31, 1
      %p258 = por %p256, %p257
      %p260 = scmp.ne.s32.totalorder %s243, %s259
      %p261 = scmp.eq.s32.totalorder %s31, 0
      %p262 = por %p260, %p261
      %p263 = scmp.le.s32.totalorder 1, %s25
      %p264 = scmp.lt.s32.totalorder %s25, 3
      %p265 = pnand %p263, %p264
      %p266 = pneg %p265
      // Predicated region
      $region9: #{tpu_custom_call.1} parent=5 // pred_check
        _
      $region10: #{tpu_custom_call.1} parent=5 // pred_check_branch
        %268 = sbr.rel (%p265) target = $region12
      $region11: #{tpu_custom_call.1} parent=5 // pred_region
        %s269 = ssub.s32 %s25, 1
        // Predicated region
        $region13: #{tpu_custom_call.1} parent=11 // pred_check
          %p270 = pneg %p124
        $region14: #{tpu_custom_call.1} parent=11 // pred_check_branch
          %272 = sbr.rel (%p270) target = $region16
        $region15: #{tpu_custom_call.1} parent=11 // pred_region
          %s274 = ssub.s32 1024, 1024
          %275 = vsyncadd [#allocation9], %s274
          %s276 = sshll.u32 [#allocation8], 4
          %s277 = int_to_ptr.vmem [resolvable:$true] %s276
          %282 = dma.hbm_to_vmem [thread:$0]  %s3, 1024, %s277, [#allocation9], 64, 64, 4
        $region16: #{tpu_custom_call.1} parent=11 // pred_fallthru
          _
        // Predicated region
        $region17: #{tpu_custom_call.1} parent=11 // pred_check
          %p283 = pneg %p145
        $region18: #{tpu_custom_call.1} parent=11 // pred_check_branch
          %285 = sbr.rel (%p283) target = $region20
        $region19: #{tpu_custom_call.1} parent=11 // pred_region
          _
        $region20: #{tpu_custom_call.1} parent=11 // pred_fallthru
          _
        // Predicated region
        $region21: #{tpu_custom_call.1} parent=11 // pred_check
          %p286 = pneg %p166
        $region22: #{tpu_custom_call.1} parent=11 // pred_check_branch
          %288 = sbr.rel (%p286) target = $region24
        $region23: #{tpu_custom_call.1} parent=11 // pred_region
          %s290 = ssub.s32 1024, 1024
          %291 = vsyncadd [#allocation9], %s290
          %s292 = sshll.u32 [#allocation10], 4
          %s293 = int_to_ptr.vmem [resolvable:$true] %s292
          %298 = dma.hbm_to_vmem [thread:$0]  %s5, 1024, %s293, [#allocation9], 64, 64, 4
        $region24: #{tpu_custom_call.1} parent=11 // pred_fallthru
          _
        // Predicated region
        $region25: #{tpu_custom_call.1} parent=11 // pred_check
          %p299 = pneg %p187
        $region26: #{tpu_custom_call.1} parent=11 // pred_check_branch
          %301 = sbr.rel (%p299) target = $region28
        $region27: #{tpu_custom_call.1} parent=11 // pred_region
          _
        $region28: #{tpu_custom_call.1} parent=11 // pred_fallthru
          _
        // Predicated region
        $region29: #{tpu_custom_call.1} parent=11 // pred_check
          %p302 = pneg %p208
        $region30: #{tpu_custom_call.1} parent=11 // pred_check_branch
          %304 = sbr.rel (%p302) target = $region32
        $region31: #{tpu_custom_call.1} parent=11 // pred_region
          _
        $region32: #{tpu_custom_call.1} parent=11 // pred_fallthru
          _
        // Predicated region
        $region33: #{tpu_custom_call.1} parent=11 // pred_check
          %p305 = pneg %p229
        $region34: #{tpu_custom_call.1} parent=11 // pred_check_branch
          %307 = sbr.rel (%p305) target = $region36
        $region35: #{tpu_custom_call.1} parent=11 // pred_region
          _
        $region36: #{tpu_custom_call.1} parent=11 // pred_fallthru
          _
      $region12: #{tpu_custom_call.1} parent=5 // pred_fallthru
        _
      %p308 = scmp.lt.s32.totalorder %s25, 2
      // Predicated region
      $region37: #{tpu_custom_call.1} parent=5 // pred_check
        %p309 = pneg %p308
      $region38: #{tpu_custom_call.1} parent=5 // pred_check_branch
        %311 = sbr.rel (%p309) target = $region40
      $region39: #{tpu_custom_call.1} parent=5 // pred_region
        // Predicated region
        $region41: #{tpu_custom_call.1} parent=39 // pred_check
          %p312 = pneg %p45
        $region42: #{tpu_custom_call.1} parent=39 // pred_check_branch
          %314 = sbr.rel (%p312) target = $region44
        $region43: #{tpu_custom_call.1} parent=39 // pred_region
          %s315 = sand.u32 %s35, 1
          %s316 = scalar_lea.sflag [#allocation3], %s315
          %s317 = sand.u32 %s35, 1
          %s318 = smul.addr %s317, 8
          %s319 = scalar_lea.vmem [#allocation2], %s318
          %s321 = ssub.s32 128, 128
          %322 = vsyncadd %s316, %s321
          %s323 = smul.addr %s25, 128
          %s324 = scalar_lea.hbm %s0, %s323
          %s326 = sshll.u32 %s319, 4
          %s327 = int_to_ptr.vmem [resolvable:$true] %s326
          %329 = dma.hbm_to_vmem [thread:$0]  %s324, 128, %s327, %s316
        $region44: #{tpu_custom_call.1} parent=39 // pred_fallthru
          _
        // Predicated region
        $region45: #{tpu_custom_call.1} parent=39 // pred_check
          %p330 = pneg %p71
        $region46: #{tpu_custom_call.1} parent=39 // pred_check_branch
          %332 = sbr.rel (%p330) target = $region48
        $region47: #{tpu_custom_call.1} parent=39 // pred_region
          %s333 = sand.u32 %s25, 1
          %s334 = scalar_lea.sflag [#allocation6], %s333
          %s335 = sand.u32 %s61, 1
          %s336 = smul.addr %s335, 4
          %s337 = scalar_lea.vmem [#allocation5], %s336
          %s339 = ssub.s32 64, 64
          %340 = vsyncadd %s334, %s339
          %s341 = smul.addr %s25, 64
          %s342 = scalar_lea.hbm %s1, %s341
          %s344 = sshll.u32 %s337, 4
          %s345 = int_to_ptr.vmem [resolvable:$true] %s344
          %347 = dma.hbm_to_vmem [thread:$0]  %s342, 64, %s345, %s334
        $region48: #{tpu_custom_call.1} parent=39 // pred_fallthru
          _
        // Predicated region
        $region49: #{tpu_custom_call.1} parent=39 // pred_check
          %p348 = pneg %p97
        $region50: #{tpu_custom_call.1} parent=39 // pred_check_branch
          %350 = sbr.rel (%p348) target = $region52
        $region51: #{tpu_custom_call.1} parent=39 // pred_region
          %s351 = sand.u32 %s25, 1
          %s352 = scalar_lea.sflag [#allocation6], %s351
          %s353 = sand.u32 %s87, 1
          %s354 = smul.addr %s353, 4
          %s355 = scalar_lea.vmem [#allocation7], %s354
          %s357 = ssub.s32 64, 64
          %358 = vsyncadd %s352, %s357
          %s359 = smul.addr %s25, 64
          %s360 = scalar_lea.hbm %s2, %s359
          %s362 = sshll.u32 %s355, 4
          %s363 = int_to_ptr.vmem [resolvable:$true] %s362
          %365 = dma.hbm_to_vmem [thread:$0]  %s360, 64, %s363, %s352
        $region52: #{tpu_custom_call.1} parent=39 // pred_fallthru
          _
      $region40: #{tpu_custom_call.1} parent=5 // pred_fallthru
        _
      %p366 = scmp.le.s32.totalorder 1, %s25
      %p367 = scmp.lt.s32.totalorder %s25, 3
      %p368 = pnand %p366, %p367
      %p369 = pneg %p368
      // Predicated region
      $region53: #{tpu_custom_call.1} parent=5 // pred_check
        _
      $region54: #{tpu_custom_call.1} parent=5 // pred_check_branch
        %371 = sbr.rel (%p368) target = $region56
      $region55: #{tpu_custom_call.1} parent=5 // pred_region
        %s372 = ssub.s32 %s25, 1
        %s373 = sand.u32 %s38, 1
        %s374 = scalar_lea.sflag [#allocation3], %s373
        %s375 = sand.u32 %s38, 1
        %s376 = smul.addr %s375, 8
        %s377 = scalar_lea.vmem [#allocation2], %s376
        // Predicated region
        $region57: #{tpu_custom_call.1} parent=55 // pred_check
          %p378 = pneg %p51
        $region58: #{tpu_custom_call.1} parent=55 // pred_check_branch
          %380 = sbr.rel (%p378) target = $region60
        $region59: #{tpu_custom_call.1} parent=55 // pred_region
          %381 = dma.done %s374, 128
        $region60: #{tpu_custom_call.1} parent=55 // pred_fallthru
          _
        %s382 = sand.u32 %s30, 1
        %s383 = scalar_lea.sflag [#allocation6], %s382
        %s384 = sand.u32 %s64, 1
        %s385 = smul.addr %s384, 4
        %s386 = scalar_lea.vmem [#allocation5], %s385
        // Predicated region
        $region61: #{tpu_custom_call.1} parent=55 // pred_check
          %p387 = pneg %p77
        $region62: #{tpu_custom_call.1} parent=55 // pred_check_branch
          %389 = sbr.rel (%p387) target = $region64
        $region63: #{tpu_custom_call.1} parent=55 // pred_region
          %390 = dma.done %s383, 64
        $region64: #{tpu_custom_call.1} parent=55 // pred_fallthru
          _
        %s391 = sand.u32 %s30, 1
        %s392 = scalar_lea.sflag [#allocation6], %s391
        %s393 = sand.u32 %s90, 1
        %s394 = smul.addr %s393, 4
        %s395 = scalar_lea.vmem [#allocation7], %s394
        // Predicated region
        $region65: #{tpu_custom_call.1} parent=55 // pred_check
          %p396 = pneg %p103
        $region66: #{tpu_custom_call.1} parent=55 // pred_check_branch
          %398 = sbr.rel (%p396) target = $region68
        $region67: #{tpu_custom_call.1} parent=55 // pred_region
          %399 = dma.done %s392, 64
        $region68: #{tpu_custom_call.1} parent=55 // pred_fallthru
          _
        // Predicated region
        $region69: #{tpu_custom_call.1} parent=55 // pred_check
          %p400 = pneg %p124
        $region70: #{tpu_custom_call.1} parent=55 // pred_check_branch
          %402 = sbr.rel (%p400) target = $region72
        $region71: #{tpu_custom_call.1} parent=55 // pred_region
          %403 = dma.done [#allocation9], 1024
        $region72: #{tpu_custom_call.1} parent=55 // pred_fallthru
          _
        // Predicated region
        $region73: #{tpu_custom_call.1} parent=55 // pred_check
          %p404 = pneg %p166
        $region74: #{tpu_custom_call.1} parent=55 // pred_check_branch
          %406 = sbr.rel (%p404) target = $region76
        $region75: #{tpu_custom_call.1} parent=55 // pred_region
          %407 = dma.done [#allocation9], 1024
        $region76: #{tpu_custom_call.1} parent=55 // pred_fallthru
          _
        %s408 = sand.u32 %s38, 1
        %s409 = scalar_lea.sflag [#allocation3], %s408
        %s410 = sand.u32 %s38, 1
        %s411 = smul.addr %s410, 8
        %s412 = scalar_lea.vmem [#allocation2], %s411
        %p413 = pneg %p51
        %p414 = pneg %p48
        %s415 = sand.u32 %s30, 1
        %s416 = scalar_lea.sflag [#allocation6], %s415
        %s417 = sand.u32 %s64, 1
        %s418 = smul.addr %s417, 4
        %s419 = scalar_lea.vmem [#allocation5], %s418
        %p420 = pneg %p77
        %p421 = pneg %p74
        %s422 = sand.u32 %s30, 1
        %s423 = scalar_lea.sflag [#allocation6], %s422
        %s424 = sand.u32 %s90, 1
        %s425 = smul.addr %s424, 4
        %s426 = scalar_lea.vmem [#allocation7], %s425
        %p427 = pneg %p103
        %p428 = pneg %p100
        %p429 = pneg %p124
        %p430 = pneg %p121
        %p431 = pneg %p145
        %p432 = pneg %p142
        %p433 = pneg %p166
        %p434 = pneg %p163
        %p435 = pneg %p187
        %p436 = pneg %p184
        %p437 = pneg %p208
        %p438 = pneg %p205
        %p439 = pneg %p229
        %p440 = pneg %p226
        %p441 = pneg %p255
        %p442 = pneg %p252
        %s443 = sand.u32 %s242, 1
        %s444 = scalar_lea.sflag [#allocation4], %s443
        %s445 = sand.u32 %s242, 1
        %s446 = smul.addr %s445, 8
        %s447 = scalar_lea.vmem [#allocation11], %s446
        %v449 = vld [vmem:[%s377] sm:$0xff]
        %v450 = vmul.f32 %v449, 0.17677669
        %v451 = vpack.c.bf16 %v450, %v450
        %v452 = vld [vmem:[%s386] sm:$0xf]
        %v453 = vld [vmem:[%s395] sm:$0xf]
        %454 = vmatprep.subr.bf16.mxu0 0
        %455 = vmatpush1.bf16.xpose.msra.mxu0 %v452
        %456 = vmatprep.subr.bf16.mxu0 0
        %457 = vmatpush1.bf16.xpose.msra.mxu0 0
        %458 = vmatprep.subr.bf16.mxu0 0
        %459 = vmatpush1.bf16.xpose.msra.mxu0 0
        %460 = vmatprep.subr.bf16.mxu0 0
        %461 = vmatpush1.bf16.xpose.msra.mxu0 0
        %462 = vmatprep.subr.bf16.mxu0 0
        %463 = vmatpush1.bf16.xpose.msra.mxu0 0
        %464 = vmatprep.subr.bf16.mxu0 0
        %465 = vmatpush1.bf16.xpose.msra.mxu0 0
        %466 = vmatprep.subr.bf16.mxu0 0
        %467 = vmatpush1.bf16.xpose.msra.mxu0 0
        %468 = vmatprep.subr.bf16.mxu0 0
        %469 = vmatpush1.bf16.xpose.msra.mxu0 0
        %470 = vmatprep.subr.bf16.mxu0 0
        %471 = vmatpush1.bf16.xpose.msra.mxu0 0
        %472 = vmatprep.subr.bf16.mxu0 0
        %473 = vmatpush1.bf16.xpose.msra.mxu0 0
        %474 = vmatprep.subr.bf16.mxu0 0
        %475 = vmatpush1.bf16.xpose.msra.mxu0 0
        %476 = vmatprep.subr.bf16.mxu0 0
        %477 = vmatpush1.bf16.xpose.msra.mxu0 0
        %478 = vmatprep.subr.bf16.mxu0 0
        %479 = vmatpush1.bf16.xpose.msra.mxu0 0
        %480 = vmatprep.subr.bf16.mxu0 0
        %481 = vmatpush1.bf16.xpose.msra.mxu0 0
        %482 = vmatprep.subr.bf16.mxu0 0
        %483 = vmatpush1.bf16.xpose.msra.mxu0 0
        %484 = vmatprep.subr.bf16.mxu0 0
        %485 = vmatpush1.bf16.xpose.msra.mxu0 0
        %486 = vmatprep.mubr.bf16.mxu0 0
        %487 = vmatmul.mubr.bf16.gmra.mrb[0].mxu0 %v451
        %v488 = vpop.f32.mrb[0].mxu0
        %v489 = vadd.f32 0.0, %v488
        %v490 = vpop.f32.mrb[0].mxu0
        %v491 = vpop.f32.mrb[0].mxu0
        %v492 = vpop.f32.mrb[0].mxu0
        %493 = vdwg.mxu0
        %vm494 = vcmask 64512
        %v495 = vsel %vm494, %v489, -inf
        %496 = vmax.xlane.f32.xlu0 %v495
        %v497 = vpop.xlane.xlu0 %496
        %v498 = vsub.f32 %v489, %v497
        %v499 = vmul.f32 %v498, 1.442695
        %v500 = vpow.pop %v499
        %v501 = vsel %vm494, %v500, 0.0
        %502 = vadd.xlane.f32.xlu0 %v501
        %v503 = vpop.xlane.xlu0 %502
        %v504 = vrcp.pop %v503
        %v505 = vmul.f32 %v500, %v504
        %v506 = vpack.c.bf16 %v505, %v505
        %v508 = vsel %vm494, %v506, 0
        %vm510 = vcmask 1043456
        %v512 = vsel %vm510, %v453, 0
        %514 = vmatprep.subr.bf16.mxu0 0
        %515 = vmatpush1.bf16.msra.mxu0 %v512
        %516 = vmatprep.subr.bf16.mxu0 0
        %517 = vmatpush1.bf16.msra.mxu0 0
        %518 = vmatprep.subr.bf16.mxu0 0
        %519 = vmatpush1.bf16.msra.mxu0 0
        %520 = vmatprep.subr.bf16.mxu0 0
        %521 = vmatpush1.bf16.msra.mxu0 0
        %522 = vmatprep.subr.bf16.mxu0 0
        %523 = vmatpush1.bf16.msra.mxu0 0
        %524 = vmatprep.subr.bf16.mxu0 0
        %525 = vmatpush1.bf16.msra.mxu0 0
        %526 = vmatprep.subr.bf16.mxu0 0
        %527 = vmatpush1.bf16.msra.mxu0 0
        %528 = vmatprep.subr.bf16.mxu0 0
        %529 = vmatpush1.bf16.msra.mxu0 0
        %530 = vmatprep.subr.bf16.mxu0 0
        %531 = vmatpush1.bf16.msra.mxu0 0
        %532 = vmatprep.subr.bf16.mxu0 0
        %533 = vmatpush1.bf16.msra.mxu0 0
        %534 = vmatprep.subr.bf16.mxu0 0
        %535 = vmatpush1.bf16.msra.mxu0 0
        %536 = vmatprep.subr.bf16.mxu0 0
        %537 = vmatpush1.bf16.msra.mxu0 0
        %538 = vmatprep.subr.bf16.mxu0 0
        %539 = vmatpush1.bf16.msra.mxu0 0
        %540 = vmatprep.subr.bf16.mxu0 0
        %541 = vmatpush1.bf16.msra.mxu0 0
        %542 = vmatprep.subr.bf16.mxu0 0
        %543 = vmatpush1.bf16.msra.mxu0 0
        %544 = vmatprep.subr.bf16.mxu0 0
        %545 = vmatpush1.bf16.msra.mxu0 0
        %546 = vmatprep.mubr.bf16.mxu0 0
        %547 = vmatmul.mubr.bf16.gmra.mrb[0].mxu0 %v508
        %v548 = vpop.f32.mrb[0].mxu0
        %v549 = vadd.f32 0.0, %v548
        %v550 = vpop.f32.mrb[0].mxu0
        %v551 = vpop.f32.mrb[0].mxu0
        %v552 = vpop.f32.mrb[0].mxu0
        %553 = vdwg.mxu0
        %v554 = vadd.f32 %v449, %v549
        %v555 = vpack.c.bf16 %v554, %v554
        %v556 = vld [vmem:[#allocation8] sm:$0xf]
        %v557 = vld [vmem:[#allocation8 + $0x4] sm:$0xf]
        %v558 = vld [vmem:[#allocation8 + $0x8] sm:$0xf]
        %v559 = vld [vmem:[#allocation8 + $0xc] sm:$0xf]
        %v560 = vld [vmem:[#allocation8 + $0x10] sm:$0xf]
        %v561 = vld [vmem:[#allocation8 + $0x14] sm:$0xf]
        %v562 = vld [vmem:[#allocation8 + $0x18] sm:$0xf]
        %v563 = vld [vmem:[#allocation8 + $0x1c] sm:$0xf]
        %v564 = vld [vmem:[#allocation8 + $0x20] sm:$0xf]
        %v565 = vld [vmem:[#allocation8 + $0x24] sm:$0xf]
        %v566 = vld [vmem:[#allocation8 + $0x28] sm:$0xf]
        %v567 = vld [vmem:[#allocation8 + $0x2c] sm:$0xf]
        %v568 = vld [vmem:[#allocation8 + $0x30] sm:$0xf]
        %v569 = vld [vmem:[#allocation8 + $0x34] sm:$0xf]
        %v570 = vld [vmem:[#allocation8 + $0x38] sm:$0xf]
        %v571 = vld [vmem:[#allocation8 + $0x3c] sm:$0xf]
        %v572 = vld [vmem:[%s4] sm:$0x1]
        %v574 = vlaneseq
        %v575 = vshrl.u32 %v574, 7
        %v576 = vsub.s32 0, %v575
        %v577 = vrot.slane %v572, %v576
        %v595 = vunpack.c.l.b16 %v556
        %v596 = vunpack.c.l.b16 %v557
        %v597 = vunpack.c.l.b16 %v558
        %v598 = vunpack.c.l.b16 %v559
        %v599 = vunpack.c.l.b16 %v560
        %v600 = vunpack.c.l.b16 %v561
        %v601 = vunpack.c.l.b16 %v562
        %v602 = vunpack.c.l.b16 %v563
        %v603 = vunpack.c.l.b16 %v564
        %v604 = vunpack.c.l.b16 %v565
        %v605 = vunpack.c.l.b16 %v566
        %v606 = vunpack.c.l.b16 %v567
        %v607 = vunpack.c.l.b16 %v568
        %v608 = vunpack.c.l.b16 %v569
        %v609 = vunpack.c.l.b16 %v570
        %v610 = vunpack.c.l.b16 %v571
        %v611 = vpack.c.b16 %v596, %v595
        %v612 = vpack.c.b16 %v598, %v597
        %v613 = vpack.c.b16 %v600, %v599
        %v614 = vpack.c.b16 %v602, %v601
        %v615 = vpack.c.b16 %v604, %v603
        %v616 = vpack.c.b16 %v606, %v605
        %v617 = vpack.c.b16 %v608, %v607
        %v618 = vpack.c.b16 %v610, %v609
        %627 = vmatprep.subr.bf16.mxu0 0
        %628 = vmatpush1.bf16.msra.mxu0 %v611
        %629 = vmatprep.subr.bf16.mxu0 0
        %630 = vmatpush1.bf16.msra.mxu0 %v612
        %631 = vmatprep.subr.bf16.mxu0 0
        %632 = vmatpush1.bf16.msra.mxu0 %v613
        %633 = vmatprep.subr.bf16.mxu0 0
        %634 = vmatpush1.bf16.msra.mxu0 %v614
        %635 = vmatprep.subr.bf16.mxu0 0
        %636 = vmatpush1.bf16.msra.mxu0 %v615
        %637 = vmatprep.subr.bf16.mxu0 0
        %638 = vmatpush1.bf16.msra.mxu0 %v616
        %639 = vmatprep.subr.bf16.mxu0 0
        %640 = vmatpush1.bf16.msra.mxu0 %v617
        %641 = vmatprep.subr.bf16.mxu0 0
        %642 = vmatpush1.bf16.msra.mxu0 %v618
        %643 = vmatprep.subr.bf16.mxu0 0
        %644 = vmatpush1.bf16.msra.mxu0 0
        %645 = vmatprep.subr.bf16.mxu0 0
        %646 = vmatpush1.bf16.msra.mxu0 0
        %647 = vmatprep.subr.bf16.mxu0 0
        %648 = vmatpush1.bf16.msra.mxu0 0
        %649 = vmatprep.subr.bf16.mxu0 0
        %650 = vmatpush1.bf16.msra.mxu0 0
        %651 = vmatprep.subr.bf16.mxu0 0
        %652 = vmatpush1.bf16.msra.mxu0 0
        %653 = vmatprep.subr.bf16.mxu0 0
        %654 = vmatpush1.bf16.msra.mxu0 0
        %655 = vmatprep.subr.bf16.mxu0 0
        %656 = vmatpush1.bf16.msra.mxu0 0
        %657 = vmatprep.subr.bf16.mxu0 0
        %658 = vmatpush1.bf16.msra.mxu0 0
        %659 = vmatprep.mubr.bf16.mxu0 0
        %660 = vmatmul.mubr.bf16.gmra.mrb[0].mxu0 %v555
        %v661 = vpop.f32.mrb[0].mxu0
        %v662 = vadd.f32 %v577, %v661
        %v663 = vpop.f32.mrb[0].mxu0
        %v664 = vpop.f32.mrb[0].mxu0
        %v665 = vpop.f32.mrb[0].mxu0
        %666 = vdwg.mxu0
        %v667 = vmax.f32 %v662, 0.0
        %v668 = vpack.c.bf16 %v667, %v667
        %v669 = vld [vmem:[#allocation10] sm:$0xf]
        %v670 = vld [vmem:[#allocation10 + $0x4] sm:$0xf]
        %v671 = vld [vmem:[#allocation10 + $0x8] sm:$0xf]
        %v672 = vld [vmem:[#allocation10 + $0xc] sm:$0xf]
        %v673 = vld [vmem:[#allocation10 + $0x10] sm:$0xf]
        %v674 = vld [vmem:[#allocation10 + $0x14] sm:$0xf]
        %v675 = vld [vmem:[#allocation10 + $0x18] sm:$0xf]
        %v676 = vld [vmem:[#allocation10 + $0x1c] sm:$0xf]
        %v677 = vld [vmem:[#allocation10 + $0x20] sm:$0xf]
        %v678 = vld [vmem:[#allocation10 + $0x24] sm:$0xf]
        %v679 = vld [vmem:[#allocation10 + $0x28] sm:$0xf]
        %v680 = vld [vmem:[#allocation10 + $0x2c] sm:$0xf]
        %v681 = vld [vmem:[#allocation10 + $0x30] sm:$0xf]
        %v682 = vld [vmem:[#allocation10 + $0x34] sm:$0xf]
        %v683 = vld [vmem:[#allocation10 + $0x38] sm:$0xf]
        %v684 = vld [vmem:[#allocation10 + $0x3c] sm:$0xf]
        %v685 = vld [vmem:[%s6] sm:$0x1]
        %v687 = vlaneseq
        %v688 = vshrl.u32 %v687, 7
        %v689 = vsub.s32 0, %v688
        %v690 = vrot.slane %v685, %v689
        %v708 = vunpack.c.l.b16 %v669
        %v709 = vunpack.c.l.b16 %v670
        %v710 = vunpack.c.l.b16 %v671
        %v711 = vunpack.c.l.b16 %v672
        %v712 = vunpack.c.l.b16 %v673
        %v713 = vunpack.c.l.b16 %v674
        %v714 = vunpack.c.l.b16 %v675
        %v715 = vunpack.c.l.b16 %v676
        %v716 = vunpack.c.l.b16 %v677
        %v717 = vunpack.c.l.b16 %v678
        %v718 = vunpack.c.l.b16 %v679
        %v719 = vunpack.c.l.b16 %v680
        %v720 = vunpack.c.l.b16 %v681
        %v721 = vunpack.c.l.b16 %v682
        %v722 = vunpack.c.l.b16 %v683
        %v723 = vunpack.c.l.b16 %v684
        %v724 = vpack.c.b16 %v709, %v708
        %v725 = vpack.c.b16 %v711, %v710
        %v726 = vpack.c.b16 %v713, %v712
        %v727 = vpack.c.b16 %v715, %v714
        %v728 = vpack.c.b16 %v717, %v716
        %v729 = vpack.c.b16 %v719, %v718
        %v730 = vpack.c.b16 %v721, %v720
        %v731 = vpack.c.b16 %v723, %v722
        %740 = vmatprep.subr.bf16.mxu0 0
        %741 = vmatpush1.bf16.msra.mxu0 %v724
        %742 = vmatprep.subr.bf16.mxu0 0
        %743 = vmatpush1.bf16.msra.mxu0 %v725
        %744 = vmatprep.subr.bf16.mxu0 0
        %745 = vmatpush1.bf16.msra.mxu0 %v726
        %746 = vmatprep.subr.bf16.mxu0 0
        %747 = vmatpush1.bf16.msra.mxu0 %v727
        %748 = vmatprep.subr.bf16.mxu0 0
        %749 = vmatpush1.bf16.msra.mxu0 %v728
        %750 = vmatprep.subr.bf16.mxu0 0
        %751 = vmatpush1.bf16.msra.mxu0 %v729
        %752 = vmatprep.subr.bf16.mxu0 0
        %753 = vmatpush1.bf16.msra.mxu0 %v730
        %754 = vmatprep.subr.bf16.mxu0 0
        %755 = vmatpush1.bf16.msra.mxu0 %v731
        %756 = vmatprep.subr.bf16.mxu0 0
        %757 = vmatpush1.bf16.msra.mxu0 0
        %758 = vmatprep.subr.bf16.mxu0 0
        %759 = vmatpush1.bf16.msra.mxu0 0
        %760 = vmatprep.subr.bf16.mxu0 0
        %761 = vmatpush1.bf16.msra.mxu0 0
        %762 = vmatprep.subr.bf16.mxu0 0
        %763 = vmatpush1.bf16.msra.mxu0 0
        %764 = vmatprep.subr.bf16.mxu0 0
        %765 = vmatpush1.bf16.msra.mxu0 0
        %766 = vmatprep.subr.bf16.mxu0 0
        %767 = vmatpush1.bf16.msra.mxu0 0
        %768 = vmatprep.subr.bf16.mxu0 0
        %769 = vmatpush1.bf16.msra.mxu0 0
        %770 = vmatprep.subr.bf16.mxu0 0
        %771 = vmatpush1.bf16.msra.mxu0 0
        %772 = vmatprep.mubr.bf16.mxu0 0
        %773 = vmatmul.mubr.bf16.gmra.mrb[0].mxu0 %v668
        %v774 = vpop.f32.mrb[0].mxu0
        %v775 = vadd.f32 %v690, %v774
        %v776 = vpop.f32.mrb[0].mxu0
        %v777 = vpop.f32.mrb[0].mxu0
        %v778 = vpop.f32.mrb[0].mxu0
        %779 = vdwg.mxu0
        %v780 = vadd.f32 %v775, %v554
        %781 = vst [vmem:[%s447] sm:$0xff] %v780
        %s782 = sand.u32 %s242, 1
        %s783 = scalar_lea.sflag [#allocation4], %s782
        %s784 = sand.u32 %s242, 1
        %s785 = smul.addr %s784, 8
        %s786 = scalar_lea.vmem [#allocation11], %s785
        // Predicated region
        $region77: #{tpu_custom_call.1} parent=55 // pred_check
          %p787 = pneg %p252
        $region78: #{tpu_custom_call.1} parent=55 // pred_check_branch
          %789 = sbr.rel (%p787) target = $region80
        $region79: #{tpu_custom_call.1} parent=55 // pred_region
          %s791 = ssub.s32 128, 128
          %792 = vsyncadd %s783, %s791
          %s793 = smul.addr %s30, 128
          %s794 = scalar_lea.hbm %s9, %s793
          %s796 = sshll.u32 %s786, 4
          %s797 = int_to_ptr.vmem [resolvable:$true] %s796
          %799 = dma.vmem_to_hbm [thread:$0]  %s797, 128, %s794, %s783
        $region80: #{tpu_custom_call.1} parent=55 // pred_fallthru
          _
      $region56: #{tpu_custom_call.1} parent=5 // pred_fallthru
        _
      %p800 = scmp.le.s32.totalorder 2, %s25
      // Predicated region
      $region81: #{tpu_custom_call.1} parent=5 // pred_check
        %p801 = pneg %p800
      $region82: #{tpu_custom_call.1} parent=5 // pred_check_branch
        %803 = sbr.rel (%p801) target = $region84
      $region83: #{tpu_custom_call.1} parent=5 // pred_region
        %s804 = ssub.s32 %s25, 2
        // Predicated region
        $region85: #{tpu_custom_call.1} parent=83 // pred_check
          %p805 = pneg %p258
        $region86: #{tpu_custom_call.1} parent=83 // pred_check_branch
          %807 = sbr.rel (%p805) target = $region88
        $region87: #{tpu_custom_call.1} parent=83 // pred_region
          %s808 = sand.u32 %s243, 1
          %s809 = scalar_lea.sflag [#allocation4], %s808
          %s810 = sand.u32 %s243, 1
          %s811 = smul.addr %s810, 8
          %s812 = scalar_lea.vmem [#allocation11], %s811
          %813 = dma.done %s809, 128
        $region88: #{tpu_custom_call.1} parent=83 // pred_fallthru
          _
      $region84: #{tpu_custom_call.1} parent=5 // pred_fallthru
        _
    $region6: #{tpu_custom_call.1} parent=1 // loop_footer
      %s29 = sadd.s32 1, %s25
    $region7: #{tpu_custom_call.1} parent=1 // loop_footer_branch
      %24 = sbr.rel target = $region3
    $region8: #{tpu_custom_call.1} parent=1 // loop_exit
      _
    %814 = vsyncpa [#allocation3], 1
    %s815 = scalar_lea.sflag [#allocation3], 1
    %816 = vsyncpa %s815, 1
    %817 = vsyncpa [#allocation6], 1
    %s818 = scalar_lea.sflag [#allocation6], 1
    %819 = vsyncpa %s818, 1
    %820 = vsyncpa [#allocation9], 1
    %821 = vsyncpa [#allocation4], 1
    %s822 = scalar_lea.sflag [#allocation4], 1
    %823 = vsyncpa %s822, 1

// kernel: tpu_custom_call.1
$region0: #{tpu_custom_call.1}
  #allocation0 [shape = 'u32[]', space=smem, size = 0x4, offset = 0x4, fixed_abs, tag = 'smem constant byte address 0x4 - core index']
  #allocation1 [shape = 'u32[144,128]{1,0:T(1,128)}', space=vmem, size = 0x12000, scoped, tag = 'internal scratch']
  %s0 = inlined_call_operand.hbm [shape: f32[2,8,128], index: 0, kind: input, shape index: {}]
  %s1 = inlined_call_operand.hbm [shape: bf16[2,8,128], index: 1, kind: input, shape index: {}]
  %s2 = inlined_call_operand.hbm [shape: bf16[2,8,128], index: 2, kind: input, shape index: {}]
  %s3 = inlined_call_operand.hbm [shape: bf16[128,128], index: 3, kind: input, shape index: {}]
  %s4 = inlined_call_operand.vmem [shape: f32[1,128], index: 4, kind: input, shape index: {}]
  %s5 = inlined_call_operand.hbm [shape: bf16[128,128], index: 5, kind: input, shape index: {}]
  %s6 = inlined_call_operand.vmem [shape: f32[1,128], index: 6, kind: input, shape index: {}]
  %s7 = inlined_call_operand.vmem [shape: f32[1,128], index: 7, kind: input, shape index: {}]
  %s8 = inlined_call_operand.vmem [shape: f32[1,128], index: 8, kind: input, shape index: {}]
  %s9 = inlined_call_operand.hbm [shape: f32[2,8,128], index: 9, kind: output, shape index: {}]
  %s10 = sld [smem:[#allocation0]]
  $region89: #{tpu_custom_call.1} parent=0
    _
  %s12 = ssub.s32 1, %s10
  %s13 = scalar_select 0, %s12, %s10
  $region1: #{tpu_custom_call.1} parent=0
    #allocation2 [shape = 'u8[8192]{0}', space=vmem, size = 0x2000, scoped, tag = 'input window, operand 0']
    #allocation3 [shape = 's32[2]{0}', space=sflag, size = 0x8, scoped, tag = 'scoped memory for tpu_custom_call.1']
    #allocation4 [shape = 's32[2]{0}', space=sflag, size = 0x8, scoped, tag = 'scoped memory for tpu_custom_call.1']
    #allocation5 [shape = 'u8[4096]{0}', space=vmem, size = 0x1000, scoped, tag = 'input window, operand 1']
    #allocation6 [shape = 's32[2]{0}', space=sflag, size = 0x8, scoped, tag = 'scoped memory for tpu_custom_call.1']
    #allocation7 [shape = 'u8[4096]{0}', space=vmem, size = 0x1000, scoped, tag = 'input window, operand 2']
    #allocation8 [shape = 'u8[32768]{0}', space=vmem, size = 0x8000, scoped, tag = 'input window, operand 3, single buffered']
    #allocation9 [shape = 's32[1]{0}', space=sflag, size = 0x4, scoped, tag = 'scoped memory for tpu_custom_call.1']
    #allocation10 [shape = 'u8[32768]{0}', space=vmem, size = 0x8000, scoped, tag = 'input window, operand 5, single buffered']
    #allocation11 [shape = 'u8[8192]{0}', space=vmem, size = 0x2000, scoped, tag = 'output window, operand 0']
    %14 = vsyncpa [#allocation3], 0
    %s15 = scalar_lea.sflag [#allocation3], 1
    %16 = vsyncpa %s15, 0
    %17 = vsyncpa [#allocation6], 0
    %s18 = scalar_lea.sflag [#allocation6], 1
    %19 = vsyncpa %s18, 0
    %20 = vsyncpa [#allocation9], 0
    %21 = vsyncpa [#allocation4], 0
    %s22 = scalar_lea.sflag [#allocation4], 1
    %23 = vsyncpa %s22, 0
    loop: start=0, step=1, limit=4
    $region2: #{tpu_custom_call.1} parent=1 // loop_pre_header
      _
    $region3: #{tpu_custom_call.1} parent=1 // loop_header
      %s25 = sphi 0, %s29
      %p26 = scmp.ge.s32.totalorder %s25, 4
      %s35 = sphi 0, %s37
      %s38 = sphi 0, %s35
      %s39 = sphi 0, %s38
      %s55 = sphi 0, %s39
      %s61 = sphi 0, %s63
      %s64 = sphi 0, %s61
      %s65 = sphi 0, %s64
      %s81 = sphi 0, %s65
      %s87 = sphi 0, %s89
      %s90 = sphi 0, %s87
      %s91 = sphi 0, %s90
      %s107 = sphi 0, %s91
      %s111 = sphi 0, %s111
      %s113 = sphi 0, %s111
      %s114 = sphi 0, %s113
      %s128 = sphi 0, %s114
      %s132 = sphi 0, %s132
      %s134 = sphi 0, %s132
      %s135 = sphi 0, %s134
      %s149 = sphi 0, %s135
      %s153 = sphi 0, %s153
      %s155 = sphi 0, %s153
      %s156 = sphi 0, %s155
      %s170 = sphi 0, %s156
      %s174 = sphi 0, %s174
      %s176 = sphi 0, %s174
      %s177 = sphi 0, %s176
      %s191 = sphi 0, %s177
      %s195 = sphi 0, %s195
      %s197 = sphi 0, %s195
      %s198 = sphi 0, %s197
      %s212 = sphi 0, %s198
      %s216 = sphi 0, %s216
      %s218 = sphi 0, %s216
      %s219 = sphi 0, %s218
      %s233 = sphi 0, %s219
      %s239 = sphi 0, %s241
      %s242 = sphi 0, %s239
      %s243 = sphi 0, %s242
      %s259 = sphi 0, %s243
    $region4: #{tpu_custom_call.1} parent=1 // loop_header_branch
      %28 = sbr.rel (%p26) target = $region8
    $region5: #{tpu_custom_call.1} parent=1 // loop_body
      %s30 = ssub.s32 %s25, 1
      %s31 = ssub.s32 %s25, 2
      %s32 = sadd.s32 %s25, 1
      %s33 = ssub.s32 %s25, %s32
      %p34 = scmp.eq.s32.totalorder %s33, 0
      %s36 = sadd.s32 %s35, 1
      %s37 = scalar_select %p34, %s35, %s36
      %p40 = pneg %p34
      %p41 = scmp.eq.s32.totalorder %s25, 1
      %p42 = por %p40, %p41
      %p43 = scmp.ne.s32.totalorder %s35, %s38
      %p44 = scmp.eq.s32.totalorder %s25, 0
      %p45 = por %p43, %p44
      %p46 = scmp.ne.s32.totalorder %s35, %s38
      %p47 = scmp.eq.s32.totalorder %s30, 1
      %p48 = por %p46, %p47
      %p49 = scmp.ne.s32.totalorder %s38, %s39
      %p50 = scmp.eq.s32.totalorder %s30, 0
      %p51 = por %p49, %p50
      %p52 = scmp.ne.s32.totalorder %s38, %s39
      %p53 = scmp.eq.s32.totalorder %s31, 1
      %p54 = por %p52, %p53
      %p56 = scmp.ne.s32.totalorder %s39, %s55
      %p57 = scmp.eq.s32.totalorder %s31, 0
      %p58 = por %p56, %p57
      %s59 = ssub.s32 %s25, %s32
      %p60 = scmp.eq.s32.totalorder %s59, 0
      %s62 = sadd.s32 %s61, 1
      %s63 = scalar_select %p60, %s61, %s62
      %p66 = pneg %p60
      %p67 = scmp.eq.s32.totalorder %s25, 1
      %p68 = por %p66, %p67
      %p69 = scmp.ne.s32.totalorder %s61, %s64
      %p70 = scmp.eq.s32.totalorder %s25, 0
      %p71 = por %p69, %p70
      %p72 = scmp.ne.s32.totalorder %s61, %s64
      %p73 = scmp.eq.s32.totalorder %s30, 1
      %p74 = por %p72, %p73
      %p75 = scmp.ne.s32.totalorder %s64, %s65
      %p76 = scmp.eq.s32.totalorder %s30, 0
      %p77 = por %p75, %p76
      %p78 = scmp.ne.s32.totalorder %s64, %s65
      %p79 = scmp.eq.s32.totalorder %s31, 1
      %p80 = por %p78, %p79
      %p82 = scmp.ne.s32.totalorder %s65, %s81
      %p83 = scmp.eq.s32.totalorder %s31, 0
      %p84 = por %p82, %p83
      %s85 = ssub.s32 %s25, %s32
      %p86 = scmp.eq.s32.totalorder %s85, 0
      %s88 = sadd.s32 %s87, 1
      %s89 = scalar_select %p86, %s87, %s88
      %p92 = pneg %p86
      %p93 = scmp.eq.s32.totalorder %s25, 1
      %p94 = por %p92, %p93
      %p95 = scmp.ne.s32.totalorder %s87, %s90
      %p96 = scmp.eq.s32.totalorder %s25, 0
      %p97 = por %p95, %p96
      %p98 = scmp.ne.s32.totalorder %s87, %s90
      %p99 = scmp.eq.s32.totalorder %s30, 1
      %p100 = por %p98, %p99
      %p101 = scmp.ne.s32.totalorder %s90, %s91
      %p102 = scmp.eq.s32.totalorder %s30, 0
      %p103 = por %p101, %p102
      %p104 = scmp.ne.s32.totalorder %s90, %s91
      %p105 = scmp.eq.s32.totalorder %s31, 1
      %p106 = por %p104, %p105
      %p108 = scmp.ne.s32.totalorder %s91, %s107
      %p109 = scmp.eq.s32.totalorder %s31, 0
      %p110 = por %p108, %p109
      %s112 = sadd.s32 %s111, 1
      %p115 = scmp.eq.s32.totalorder %s25, 1
      %p116 = scmp.ne.s32.totalorder %s111, %s113
      %p117 = scmp.eq.s32.totalorder %s25, 0
      %p118 = por %p116, %p117
      %p119 = scmp.ne.s32.totalorder %s111, %s113
      %p120 = scmp.eq.s32.totalorder %s30, 1
      %p121 = por %p119, %p120
      %p122 = scmp.ne.s32.totalorder %s113, %s114
      %p123 = scmp.eq.s32.totalorder %s30, 0
      %p124 = por %p122, %p123
      %p125 = scmp.ne.s32.totalorder %s113, %s114
      %p126 = scmp.eq.s32.totalorder %s31, 1
      %p127 = por %p125, %p126
      %p129 = scmp.ne.s32.totalorder %s114, %s128
      %p130 = scmp.eq.s32.totalorder %s31, 0
      %p131 = por %p129, %p130
      %s133 = sadd.s32 %s132, 1
      %p136 = scmp.eq.s32.totalorder %s25, 1
      %p137 = scmp.ne.s32.totalorder %s132, %s134
      %p138 = scmp.eq.s32.totalorder %s25, 0
      %p139 = por %p137, %p138
      %p140 = scmp.ne.s32.totalorder %s132, %s134
      %p141 = scmp.eq.s32.totalorder %s30, 1
      %p142 = por %p140, %p141
      %p143 = scmp.ne.s32.totalorder %s134, %s135
      %p144 = scmp.eq.s32.totalorder %s30, 0
      %p145 = por %p143, %p144
      %p146 = scmp.ne.s32.totalorder %s134, %s135
      %p147 = scmp.eq.s32.totalorder %s31, 1
      %p148 = por %p146, %p147
      %p150 = scmp.ne.s32.totalorder %s135, %s149
      %p151 = scmp.eq.s32.totalorder %s31, 0
      %p152 = por %p150, %p151
      %s154 = sadd.s32 %s153, 1
      %p157 = scmp.eq.s32.totalorder %s25, 1
      %p158 = scmp.ne.s32.totalorder %s153, %s155
      %p159 = scmp.eq.s32.totalorder %s25, 0
      %p160 = por %p158, %p159
      %p161 = scmp.ne.s32.totalorder %s153, %s155
      %p162 = scmp.eq.s32.totalorder %s30, 1
      %p163 = por %p161, %p162
      %p164 = scmp.ne.s32.totalorder %s155, %s156
      %p165 = scmp.eq.s32.totalorder %s30, 0
      %p166 = por %p164, %p165
      %p167 = scmp.ne.s32.totalorder %s155, %s156
      %p168 = scmp.eq.s32.totalorder %s31, 1
      %p169 = por %p167, %p168
      %p171 = scmp.ne.s32.totalorder %s156, %s170
      %p172 = scmp.eq.s32.totalorder %s31, 0
      %p173 = por %p171, %p172
      %s175 = sadd.s32 %s174, 1
      %p178 = scmp.eq.s32.totalorder %s25, 1
      %p179 = scmp.ne.s32.totalorder %s174, %s176
      %p180 = scmp.eq.s32.totalorder %s25, 0
      %p181 = por %p179, %p180
      %p182 = scmp.ne.s32.totalorder %s174, %s176
      %p183 = scmp.eq.s32.totalorder %s30, 1
      %p184 = por %p182, %p183
      %p185 = scmp.ne.s32.totalorder %s176, %s177
      %p186 = scmp.eq.s32.totalorder %s30, 0
      %p187 = por %p185, %p186
      %p188 = scmp.ne.s32.totalorder %s176, %s177
      %p189 = scmp.eq.s32.totalorder %s31, 1
      %p190 = por %p188, %p189
      %p192 = scmp.ne.s32.totalorder %s177, %s191
      %p193 = scmp.eq.s32.totalorder %s31, 0
      %p194 = por %p192, %p193
      %s196 = sadd.s32 %s195, 1
      %p199 = scmp.eq.s32.totalorder %s25, 1
      %p200 = scmp.ne.s32.totalorder %s195, %s197
      %p201 = scmp.eq.s32.totalorder %s25, 0
      %p202 = por %p200, %p201
      %p203 = scmp.ne.s32.totalorder %s195, %s197
      %p204 = scmp.eq.s32.totalorder %s30, 1
      %p205 = por %p203, %p204
      %p206 = scmp.ne.s32.totalorder %s197, %s198
      %p207 = scmp.eq.s32.totalorder %s30, 0
      %p208 = por %p206, %p207
      %p209 = scmp.ne.s32.totalorder %s197, %s198
      %p210 = scmp.eq.s32.totalorder %s31, 1
      %p211 = por %p209, %p210
      %p213 = scmp.ne.s32.totalorder %s198, %s212
      %p214 = scmp.eq.s32.totalorder %s31, 0
      %p215 = por %p213, %p214
      %s217 = sadd.s32 %s216, 1
      %p220 = scmp.eq.s32.totalorder %s25, 1
      %p221 = scmp.ne.s32.totalorder %s216, %s218
      %p222 = scmp.eq.s32.totalorder %s25, 0
      %p223 = por %p221, %p222
      %p224 = scmp.ne.s32.totalorder %s216, %s218
      %p225 = scmp.eq.s32.totalorder %s30, 1
      %p226 = por %p224, %p225
      %p227 = scmp.ne.s32.totalorder %s218, %s219
      %p228 = scmp.eq.s32.totalorder %s30, 0
      %p229 = por %p227, %p228
      %p230 = scmp.ne.s32.totalorder %s218, %s219
      %p231 = scmp.eq.s32.totalorder %s31, 1
      %p232 = por %p230, %p231
      %p234 = scmp.ne.s32.totalorder %s219, %s233
      %p235 = scmp.eq.s32.totalorder %s31, 0
      %p236 = por %p234, %p235
      %s237 = ssub.s32 %s25, %s32
      %p238 = scmp.eq.s32.totalorder %s237, 0
      %s240 = sadd.s32 %s239, 1
      %s241 = scalar_select %p238, %s239, %s240
      %p244 = pneg %p238
      %p245 = scmp.eq.s32.totalorder %s25, 1
      %p246 = por %p244, %p245
      %p247 = scmp.ne.s32.totalorder %s239, %s242
      %p248 = scmp.eq.s32.totalorder %s25, 0
      %p249 = por %p247, %p248
      %p250 = scmp.ne.s32.totalorder %s239, %s242
      %p251 = scmp.eq.s32.totalorder %s30, 1
      %p252 = por %p250, %p251
      %p253 = scmp.ne.s32.totalorder %s242, %s243
      %p254 = scmp.eq.s32.totalorder %s30, 0
      %p255 = por %p253, %p254
      %p256 = scmp.ne.s32.totalorder %s242, %s243
      %p257 = scmp.eq.s32.totalorder %s31, 1
      %p258 = por %p256, %p257
      %p260 = scmp.ne.s32.totalorder %s243, %s259
      %p261 = scmp.eq.s32.totalorder %s31, 0
      %p262 = por %p260, %p261
      %p263 = scmp.le.s32.totalorder 1, %s25
      %p264 = scmp.lt.s32.totalorder %s25, 3
      %p265 = pnand %p263, %p264
      %p266 = pneg %p265
      // Predicated region
      $region9: #{tpu_custom_call.1} parent=5 // pred_check
        _
      $region10: #{tpu_custom_call.1} parent=5 // pred_check_branch
        %268 = sbr.rel (%p265) target = $region12
      $region11: #{tpu_custom_call.1} parent=5 // pred_region
        %s269 = ssub.s32 %s25, 1
        // Predicated region
        $region13: #{tpu_custom_call.1} parent=11 // pred_check
          %p270 = pneg %p124
        $region14: #{tpu_custom_call.1} parent=11 // pred_check_branch
          %272 = sbr.rel (%p270) target = $region16
        $region15: #{tpu_custom_call.1} parent=11 // pred_region
          %s274 = ssub.s32 1024, 1024
          %275 = vsyncadd [#allocation9], %s274
          %s276 = sshll.u32 [#allocation8], 4
          %s277 = int_to_ptr.vmem [resolvable:$true] %s276
          %282 = dma.hbm_to_vmem [thread:$0]  %s3, 1024, %s277, [#allocation9], 64, 64, 4
        $region16: #{tpu_custom_call.1} parent=11 // pred_fallthru
          _
        // Predicated region
        $region17: #{tpu_custom_call.1} parent=11 // pred_check
          %p283 = pneg %p145
        $region18: #{tpu_custom_call.1} parent=11 // pred_check_branch
          %285 = sbr.rel (%p283) target = $region20
        $region19: #{tpu_custom_call.1} parent=11 // pred_region
          _
        $region20: #{tpu_custom_call.1} parent=11 // pred_fallthru
          _
        // Predicated region
        $region21: #{tpu_custom_call.1} parent=11 // pred_check
          %p286 = pneg %p166
        $region22: #{tpu_custom_call.1} parent=11 // pred_check_branch
          %288 = sbr.rel (%p286) target = $region24
        $region23: #{tpu_custom_call.1} parent=11 // pred_region
          %s290 = ssub.s32 1024, 1024
          %291 = vsyncadd [#allocation9], %s290
          %s292 = sshll.u32 [#allocation10], 4
          %s293 = int_to_ptr.vmem [resolvable:$true] %s292
          %298 = dma.hbm_to_vmem [thread:$0]  %s5, 1024, %s293, [#allocation9], 64, 64, 4
        $region24: #{tpu_custom_call.1} parent=11 // pred_fallthru
          _
        // Predicated region
        $region25: #{tpu_custom_call.1} parent=11 // pred_check
          %p299 = pneg %p187
        $region26: #{tpu_custom_call.1} parent=11 // pred_check_branch
          %301 = sbr.rel (%p299) target = $region28
        $region27: #{tpu_custom_call.1} parent=11 // pred_region
          _
        $region28: #{tpu_custom_call.1} parent=11 // pred_fallthru
          _
        // Predicated region
        $region29: #{tpu_custom_call.1} parent=11 // pred_check
          %p302 = pneg %p208
        $region30: #{tpu_custom_call.1} parent=11 // pred_check_branch
          %304 = sbr.rel (%p302) target = $region32
        $region31: #{tpu_custom_call.1} parent=11 // pred_region
          _
        $region32: #{tpu_custom_call.1} parent=11 // pred_fallthru
          _
        // Predicated region
        $region33: #{tpu_custom_call.1} parent=11 // pred_check
          %p305 = pneg %p229
        $region34: #{tpu_custom_call.1} parent=11 // pred_check_branch
          %307 = sbr.rel (%p305) target = $region36
        $region35: #{tpu_custom_call.1} parent=11 // pred_region
          _
        $region36: #{tpu_custom_call.1} parent=11 // pred_fallthru
          _
      $region12: #{tpu_custom_call.1} parent=5 // pred_fallthru
        _
      %p308 = scmp.lt.s32.totalorder %s25, 2
      // Predicated region
      $region37: #{tpu_custom_call.1} parent=5 // pred_check
        %p309 = pneg %p308
      $region38: #{tpu_custom_call.1} parent=5 // pred_check_branch
        %311 = sbr.rel (%p309) target = $region40
      $region39: #{tpu_custom_call.1} parent=5 // pred_region
        // Predicated region
        $region41: #{tpu_custom_call.1} parent=39 // pred_check
          %p312 = pneg %p45
        $region42: #{tpu_custom_call.1} parent=39 // pred_check_branch
          %314 = sbr.rel (%p312) target = $region44
        $region43: #{tpu_custom_call.1} parent=39 // pred_region
          %s315 = sand.u32 %s35, 1
          %s316 = scalar_lea.sflag [#allocation3], %s315
          %s317 = sand.u32 %s35, 1
          %s318 = smul.addr %s317, 8
          %s319 = scalar_lea.vmem [#allocation2], %s318
          %s321 = ssub.s32 128, 128
          %322 = vsyncadd %s316, %s321
          %s323 = smul.addr %s25, 128
          %s324 = scalar_lea.hbm %s0, %s323
          %s326 = sshll.u32 %s319, 4
          %s327 = int_to_ptr.vmem [resolvable:$true] %s326
          %329 = dma.hbm_to_vmem [thread:$0]  %s324, 128, %s327, %s316
        $region44: #{tpu_custom_call.1} parent=39 // pred_fallthru
          _
        // Predicated region
        $region45: #{tpu_custom_call.1} parent=39 // pred_check
          %p330 = pneg %p71
        $region46: #{tpu_custom_call.1} parent=39 // pred_check_branch
          %332 = sbr.rel (%p330) target = $region48
        $region47: #{tpu_custom_call.1} parent=39 // pred_region
          %s333 = sand.u32 %s25, 1
          %s334 = scalar_lea.sflag [#allocation6], %s333
          %s335 = sand.u32 %s61, 1
          %s336 = smul.addr %s335, 4
          %s337 = scalar_lea.vmem [#allocation5], %s336
          %s339 = ssub.s32 64, 64
          %340 = vsyncadd %s334, %s339
          %s341 = smul.addr %s25, 64
          %s342 = scalar_lea.hbm %s1, %s341
          %s344 = sshll.u32 %s337, 4
          %s345 = int_to_ptr.vmem [resolvable:$true] %s344
          %347 = dma.hbm_to_vmem [thread:$0]  %s342, 64, %s345, %s334
        $region48: #{tpu_custom_call.1} parent=39 // pred_fallthru
          _
        // Predicated region
        $region49: #{tpu_custom_call.1} parent=39 // pred_check
          %p348 = pneg %p97
        $region50: #{tpu_custom_call.1} parent=39 // pred_check_branch
          %350 = sbr.rel (%p348) target = $region52
        $region51: #{tpu_custom_call.1} parent=39 // pred_region
          %s351 = sand.u32 %s25, 1
          %s352 = scalar_lea.sflag [#allocation6], %s351
          %s353 = sand.u32 %s87, 1
          %s354 = smul.addr %s353, 4
          %s355 = scalar_lea.vmem [#allocation7], %s354
          %s357 = ssub.s32 64, 64
          %358 = vsyncadd %s352, %s357
          %s359 = smul.addr %s25, 64
          %s360 = scalar_lea.hbm %s2, %s359
          %s362 = sshll.u32 %s355, 4
          %s363 = int_to_ptr.vmem [resolvable:$true] %s362
          %365 = dma.hbm_to_vmem [thread:$0]  %s360, 64, %s363, %s352
        $region52: #{tpu_custom_call.1} parent=39 // pred_fallthru
          _
      $region40: #{tpu_custom_call.1} parent=5 // pred_fallthru
        _
      %p366 = scmp.le.s32.totalorder 1, %s25
      %p367 = scmp.lt.s32.totalorder %s25, 3
      %p368 = pnand %p366, %p367
      %p369 = pneg %p368
      // Predicated region
      $region53: #{tpu_custom_call.1} parent=5 // pred_check
        _
      $region54: #{tpu_custom_call.1} parent=5 // pred_check_branch
        %371 = sbr.rel (%p368) target = $region56
      $region55: #{tpu_custom_call.1} parent=5 // pred_region
        %s372 = ssub.s32 %s25, 1
        %s373 = sand.u32 %s38, 1
        %s374 = scalar_lea.sflag [#allocation3], %s373
        %s375 = sand.u32 %s38, 1
        %s376 = smul.addr %s375, 8
        %s377 = scalar_lea.vmem [#allocation2], %s376
        // Predicated region
        $region57: #{tpu_custom_call.1} parent=55 // pred_check
          %p378 = pneg %p51
        $region58: #{tpu_custom_call.1} parent=55 // pred_check_branch
          %380 = sbr.rel (%p378) target = $region60
        $region59: #{tpu_custom_call.1} parent=55 // pred_region
          %381 = dma.done %s374, 128
        $region60: #{tpu_custom_call.1} parent=55 // pred_fallthru
          _
        %s382 = sand.u32 %s30, 1
        %s383 = scalar_lea.sflag [#allocation6], %s382
        %s384 = sand.u32 %s64, 1
        %s385 = smul.addr %s384, 4
        %s386 = scalar_lea.vmem [#allocation5], %s385
        // Predicated region
        $region61: #{tpu_custom_call.1} parent=55 // pred_check
          %p387 = pneg %p77
        $region62: #{tpu_custom_call.1} parent=55 // pred_check_branch
          %389 = sbr.rel (%p387) target = $region64
        $region63: #{tpu_custom_call.1} parent=55 // pred_region
          %390 = dma.done %s383, 64
        $region64: #{tpu_custom_call.1} parent=55 // pred_fallthru
          _
        %s391 = sand.u32 %s30, 1
        %s392 = scalar_lea.sflag [#allocation6], %s391
        %s393 = sand.u32 %s90, 1
        %s394 = smul.addr %s393, 4
        %s395 = scalar_lea.vmem [#allocation7], %s394
        // Predicated region
        $region65: #{tpu_custom_call.1} parent=55 // pred_check
          %p396 = pneg %p103
        $region66: #{tpu_custom_call.1} parent=55 // pred_check_branch
          %398 = sbr.rel (%p396) target = $region68
        $region67: #{tpu_custom_call.1} parent=55 // pred_region
          %399 = dma.done %s392, 64
        $region68: #{tpu_custom_call.1} parent=55 // pred_fallthru
          _
        // Predicated region
        $region69: #{tpu_custom_call.1} parent=55 // pred_check
          %p400 = pneg %p124
        $region70: #{tpu_custom_call.1} parent=55 // pred_check_branch
          %402 = sbr.rel (%p400) target = $region72
        $region71: #{tpu_custom_call.1} parent=55 // pred_region
          %403 = dma.done [#allocation9], 1024
        $region72: #{tpu_custom_call.1} parent=55 // pred_fallthru
          _
        // Predicated region
        $region73: #{tpu_custom_call.1} parent=55 // pred_check
          %p404 = pneg %p166
        $region74: #{tpu_custom_call.1} parent=55 // pred_check_branch
          %406 = sbr.rel (%p404) target = $region76
        $region75: #{tpu_custom_call.1} parent=55 // pred_region
          %407 = dma.done [#allocation9], 1024
        $region76: #{tpu_custom_call.1} parent=55 // pred_fallthru
          _
        %s408 = sand.u32 %s38, 1
        %s409 = scalar_lea.sflag [#allocation3], %s408
        %s410 = sand.u32 %s38, 1
        %s411 = smul.addr %s410, 8
        %s412 = scalar_lea.vmem [#allocation2], %s411
        %p413 = pneg %p51
        %p414 = pneg %p48
        %s415 = sand.u32 %s30, 1
        %s416 = scalar_lea.sflag [#allocation6], %s415
        %s417 = sand.u32 %s64, 1
        %s418 = smul.addr %s417, 4
        %s419 = scalar_lea.vmem [#allocation5], %s418
        %p420 = pneg %p77
        %p421 = pneg %p74
        %s422 = sand.u32 %s30, 1
        %s423 = scalar_lea.sflag [#allocation6], %s422
        %s424 = sand.u32 %s90, 1
        %s425 = smul.addr %s424, 4
        %s426 = scalar_lea.vmem [#allocation7], %s425
        %p427 = pneg %p103
        %p428 = pneg %p100
        %p429 = pneg %p124
        %p430 = pneg %p121
        %p431 = pneg %p145
        %p432 = pneg %p142
        %p433 = pneg %p166
        %p434 = pneg %p163
        %p435 = pneg %p187
        %p436 = pneg %p184
        %p437 = pneg %p208
        %p438 = pneg %p205
        %p439 = pneg %p229
        %p440 = pneg %p226
        %p441 = pneg %p255
        %p442 = pneg %p252
        %s443 = sand.u32 %s242, 1
        %s444 = scalar_lea.sflag [#allocation4], %s443
        %s445 = sand.u32 %s242, 1
        %s446 = smul.addr %s445, 8
        %s447 = scalar_lea.vmem [#allocation11], %s446
        %v449 = vld [vmem:[%s377] sm:$0xff]
        %v450 = vmul.f32 %v449, 0.17677669
        %v451 = vpack.c.bf16 %v450, %v450
        %v452 = vld [vmem:[%s386] sm:$0xf]
        %v453 = vld [vmem:[%s395] sm:$0xf]
        %454 = vmatprep.subr.bf16.mxu0 0
        %455 = vmatpush1.bf16.xpose.msra.mxu0 %v452
        %456 = vmatprep.subr.bf16.mxu0 0
        %457 = vmatpush1.bf16.xpose.msra.mxu0 0
        %458 = vmatprep.subr.bf16.mxu0 0
        %459 = vmatpush1.bf16.xpose.msra.mxu0 0
        %460 = vmatprep.subr.bf16.mxu0 0
        %461 = vmatpush1.bf16.xpose.msra.mxu0 0
        %462 = vmatprep.subr.bf16.mxu0 0
        %463 = vmatpush1.bf16.xpose.msra.mxu0 0
        %464 = vmatprep.subr.bf16.mxu0 0
        %465 = vmatpush1.bf16.xpose.msra.mxu0 0
        %466 = vmatprep.subr.bf16.mxu0 0
        %467 = vmatpush1.bf16.xpose.msra.mxu0 0
        %468 = vmatprep.subr.bf16.mxu0 0
        %469 = vmatpush1.bf16.xpose.msra.mxu0 0
        %470 = vmatprep.subr.bf16.mxu0 0
        %471 = vmatpush1.bf16.xpose.msra.mxu0 0
        %472 = vmatprep.subr.bf16.mxu0 0
        %473 = vmatpush1.bf16.xpose.msra.mxu0 0
        %474 = vmatprep.subr.bf16.mxu0 0
        %475 = vmatpush1.bf16.xpose.msra.mxu0 0
        %476 = vmatprep.subr.bf16.mxu0 0
        %477 = vmatpush1.bf16.xpose.msra.mxu0 0
        %478 = vmatprep.subr.bf16.mxu0 0
        %479 = vmatpush1.bf16.xpose.msra.mxu0 0
        %480 = vmatprep.subr.bf16.mxu0 0
        %481 = vmatpush1.bf16.xpose.msra.mxu0 0
        %482 = vmatprep.subr.bf16.mxu0 0
        %483 = vmatpush1.bf16.xpose.msra.mxu0 0
        %484 = vmatprep.subr.bf16.mxu0 0
        %485 = vmatpush1.bf16.xpose.msra.mxu0 0
        %486 = vmatprep.mubr.bf16.mxu0 0
        %487 = vmatmul.mubr.bf16.gmra.mrb[0].mxu0 %v451
        %v488 = vpop.f32.mrb[0].mxu0
        %v489 = vadd.f32 0.0, %v488
        %v490 = vpop.f32.mrb[0].mxu0
        %v491 = vpop.f32.mrb[0].mxu0
        %v492 = vpop.f32.mrb[0].mxu0
        %493 = vdwg.mxu0
        %vm494 = vcmask 64512
        %v495 = vsel %vm494, %v489, -inf
        %496 = vmax.xlane.f32.xlu0 %v495
        %v497 = vpop.xlane.xlu0 %496
        %v498 = vsub.f32 %v489, %v497
        %v499 = vmul.f32 %v498, 1.442695
        %v500 = vpow.pop %v499
        %v501 = vsel %vm494, %v500, 0.0
        %502 = vadd.xlane.f32.xlu0 %v501
        %v503 = vpop.xlane.xlu0 %502
        %v504 = vrcp.pop %v503
        %v505 = vmul.f32 %v500, %v504
        %v506 = vpack.c.bf16 %v505, %v505
        %v508 = vsel %vm494, %v506, 0
        %vm510 = vcmask 1043456
        %v512 = vsel %vm510, %v453, 0
        %514 = vmatprep.subr.bf16.mxu0 0
        %515 = vmatpush1.bf16.msra.mxu0 %v512
        %516 = vmatprep.subr.bf16.mxu0 0
        %517 = vmatpush1.bf16.msra.mxu0 0
        %518 = vmatprep.subr.bf16.mxu0 0
        %519 = vmatpush1.bf16.msra.mxu0 0
        %520 = vmatprep.subr.bf16.mxu0 0
        %521 = vmatpush1.bf16.msra.mxu0 0
        %522 = vmatprep.subr.bf16.mxu0 0
        %523 = vmatpush1.bf16.msra.mxu0 0
        %524 = vmatprep.subr.bf16.mxu0 0
        %525 = vmatpush1.bf16.msra.mxu0 0
        %526 = vmatprep.subr.bf16.mxu0 0
        %527 = vmatpush1.bf16.msra.mxu0 0
        %528 = vmatprep.subr.bf16.mxu0 0
        %529 = vmatpush1.bf16.msra.mxu0 0
        %530 = vmatprep.subr.bf16.mxu0 0
        %531 = vmatpush1.bf16.msra.mxu0 0
        %532 = vmatprep.subr.bf16.mxu0 0
        %533 = vmatpush1.bf16.msra.mxu0 0
        %534 = vmatprep.subr.bf16.mxu0 0
        %535 = vmatpush1.bf16.msra.mxu0 0
        %536 = vmatprep.subr.bf16.mxu0 0
        %537 = vmatpush1.bf16.msra.mxu0 0
        %538 = vmatprep.subr.bf16.mxu0 0
        %539 = vmatpush1.bf16.msra.mxu0 0
        %540 = vmatprep.subr.bf16.mxu0 0
        %541 = vmatpush1.bf16.msra.mxu0 0
        %542 = vmatprep.subr.bf16.mxu0 0
        %543 = vmatpush1.bf16.msra.mxu0 0
        %544 = vmatprep.subr.bf16.mxu0 0
        %545 = vmatpush1.bf16.msra.mxu0 0
        %546 = vmatprep.mubr.bf16.mxu0 0
        %547 = vmatmul.mubr.bf16.gmra.mrb[0].mxu0 %v508
        %v548 = vpop.f32.mrb[0].mxu0
        %v549 = vadd.f32 0.0, %v548
        %v550 = vpop.f32.mrb[0].mxu0
        %v551 = vpop.f32.mrb[0].mxu0
        %v552 = vpop.f32.mrb[0].mxu0
        %553 = vdwg.mxu0
        %v554 = vadd.f32 %v449, %v549
        %v555 = vpack.c.bf16 %v554, %v554
        %v556 = vld [vmem:[#allocation8] sm:$0xf]
        %v557 = vld [vmem:[#allocation8 + $0x4] sm:$0xf]
        %v558 = vld [vmem:[#allocation8 + $0x8] sm:$0xf]
        %v559 = vld [vmem:[#allocation8 + $0xc] sm:$0xf]
        %v560 = vld [vmem:[#allocation8 + $0x10] sm:$0xf]
        %v561 = vld [vmem:[#allocation8 + $0x14] sm:$0xf]
        %v562 = vld [vmem:[#allocation8 + $0x18] sm:$0xf]
        %v563 = vld [vmem:[#allocation8 + $0x1c] sm:$0xf]
        %v564 = vld [vmem:[#allocation8 + $0x20] sm:$0xf]
        %v565 = vld [vmem:[#allocation8 + $0x24] sm:$0xf]
        %v566 = vld [vmem:[#allocation8 + $0x28] sm:$0xf]
        %v567 = vld [vmem:[#allocation8 + $0x2c] sm:$0xf]
        %v568 = vld [vmem:[#allocation8 + $0x30] sm:$0xf]
        %v569 = vld [vmem:[#allocation8 + $0x34] sm:$0xf]
        %v570 = vld [vmem:[#allocation8 + $0x38] sm:$0xf]
        %v571 = vld [vmem:[#allocation8 + $0x3c] sm:$0xf]
        %v572 = vld [vmem:[%s4] sm:$0x1]
        %v574 = vlaneseq
        %v575 = vshrl.u32 %v574, 7
        %v576 = vsub.s32 0, %v575
        %v577 = vrot.slane %v572, %v576
        %v595 = vunpack.c.l.b16 %v556
        %v596 = vunpack.c.l.b16 %v557
        %v597 = vunpack.c.l.b16 %v558
        %v598 = vunpack.c.l.b16 %v559
        %v599 = vunpack.c.l.b16 %v560
        %v600 = vunpack.c.l.b16 %v561
        %v601 = vunpack.c.l.b16 %v562
        %v602 = vunpack.c.l.b16 %v563
        %v603 = vunpack.c.l.b16 %v564
        %v604 = vunpack.c.l.b16 %v565
        %v605 = vunpack.c.l.b16 %v566
        %v606 = vunpack.c.l.b16 %v567
        %v607 = vunpack.c.l.b16 %v568
        %v608 = vunpack.c.l.b16 %v569
        %v609 = vunpack.c.l.b16 %v570
        %v610 = vunpack.c.l.b16 %v571
        %v611 = vpack.c.b16 %v596, %v595
        %v612 = vpack.c.b16 %v598, %v597
        %v613 = vpack.c.b16 %v600, %v599
        %v614 = vpack.c.b16 %v602, %v601
        %v615 = vpack.c.b16 %v604, %v603
        %v616 = vpack.c.b16 %v606, %v605
        %v617 = vpack.c.b16 %v608, %v607
        %v618 = vpack.c.b16 %v610, %v609
        %627 = vmatprep.subr.bf16.mxu0 0
        %628 = vmatpush1.bf16.msra.mxu0 %v611
        %629 = vmatprep.subr.bf16.mxu0 0
        %630 = vmatpush1.bf16.msra.mxu0 %v612
        %631 = vmatprep.subr.bf16.mxu0 0
        %632 = vmatpush1.bf16.msra.mxu0 %v613
        %633 = vmatprep.subr.bf16.mxu0 0
        %634 = vmatpush1.bf16.msra.mxu0 %v614
        %635 = vmatprep.subr.bf16.mxu0 0
        %636 = vmatpush1.bf16.msra.mxu0 %v615
        %637 = vmatprep.subr.bf16.mxu0 0
        %638 = vmatpush1.bf16.msra.mxu0 %v616
        %639 = vmatprep.subr.bf16.mxu0 0
        %640 = vmatpush1.bf16.msra.mxu0 %v617
        %641 = vmatprep.subr.bf16.mxu0 0
        %642 = vmatpush1.bf16.msra.mxu0 %v618
        %643 = vmatprep.subr.bf16.mxu0 0
        %644 = vmatpush1.bf16.msra.mxu0 0
        %645 = vmatprep.subr.bf16.mxu0 0
        %646 = vmatpush1.bf16.msra.mxu0 0
        %647 = vmatprep.subr.bf16.mxu0 0
        %648 = vmatpush1.bf16.msra.mxu0 0
        %649 = vmatprep.subr.bf16.mxu0 0
        %650 = vmatpush1.bf16.msra.mxu0 0
        %651 = vmatprep.subr.bf16.mxu0 0
        %652 = vmatpush1.bf16.msra.mxu0 0
        %653 = vmatprep.subr.bf16.mxu0 0
        %654 = vmatpush1.bf16.msra.mxu0 0
        %655 = vmatprep.subr.bf16.mxu0 0
        %656 = vmatpush1.bf16.msra.mxu0 0
        %657 = vmatprep.subr.bf16.mxu0 0
        %658 = vmatpush1.bf16.msra.mxu0 0
        %659 = vmatprep.mubr.bf16.mxu0 0
        %660 = vmatmul.mubr.bf16.gmra.mrb[0].mxu0 %v555
        %v661 = vpop.f32.mrb[0].mxu0
        %v662 = vadd.f32 %v577, %v661
        %v663 = vpop.f32.mrb[0].mxu0
        %v664 = vpop.f32.mrb[0].mxu0
        %v665 = vpop.f32.mrb[0].mxu0
        %666 = vdwg.mxu0
        %v667 = vmax.f32 %v662, 0.0
        %v668 = vpack.c.bf16 %v667, %v667
        %v669 = vld [vmem:[#allocation10] sm:$0xf]
        %v670 = vld [vmem:[#allocation10 + $0x4] sm:$0xf]
        %v671 = vld [vmem:[#allocation10 + $0x8] sm:$0xf]
        %v672 = vld [vmem:[#allocation10 + $0xc] sm:$0xf]
        %v673 = vld [vmem:[#allocation10 + $0x10] sm:$0xf]
        %v674 = vld [vmem:[#allocation10 + $0x14] sm:$0xf]
        %v675 = vld [vmem:[#allocation10 + $0x18] sm:$0xf]
        %v676 = vld [vmem:[#allocation10 + $0x1c] sm:$0xf]
        %v677 = vld [vmem:[#allocation10 + $0x20] sm:$0xf]
        %v678 = vld [vmem:[#allocation10 + $0x24] sm:$0xf]
        %v679 = vld [vmem:[#allocation10 + $0x28] sm:$0xf]
        %v680 = vld [vmem:[#allocation10 + $0x2c] sm:$0xf]
        %v681 = vld [vmem:[#allocation10 + $0x30] sm:$0xf]
        %v682 = vld [vmem:[#allocation10 + $0x34] sm:$0xf]
        %v683 = vld [vmem:[#allocation10 + $0x38] sm:$0xf]
        %v684 = vld [vmem:[#allocation10 + $0x3c] sm:$0xf]
        %v685 = vld [vmem:[%s6] sm:$0x1]
        %v687 = vlaneseq
        %v688 = vshrl.u32 %v687, 7
        %v689 = vsub.s32 0, %v688
        %v690 = vrot.slane %v685, %v689
        %v708 = vunpack.c.l.b16 %v669
        %v709 = vunpack.c.l.b16 %v670
        %v710 = vunpack.c.l.b16 %v671
        %v711 = vunpack.c.l.b16 %v672
        %v712 = vunpack.c.l.b16 %v673
        %v713 = vunpack.c.l.b16 %v674
        %v714 = vunpack.c.l.b16 %v675
        %v715 = vunpack.c.l.b16 %v676
        %v716 = vunpack.c.l.b16 %v677
        %v717 = vunpack.c.l.b16 %v678
        %v718 = vunpack.c.l.b16 %v679
        %v719 = vunpack.c.l.b16 %v680
        %v720 = vunpack.c.l.b16 %v681
        %v721 = vunpack.c.l.b16 %v682
        %v722 = vunpack.c.l.b16 %v683
        %v723 = vunpack.c.l.b16 %v684
        %v724 = vpack.c.b16 %v709, %v708
        %v725 = vpack.c.b16 %v711, %v710
        %v726 = vpack.c.b16 %v713, %v712
        %v727 = vpack.c.b16 %v715, %v714
        %v728 = vpack.c.b16 %v717, %v716
        %v729 = vpack.c.b16 %v719, %v718
        %v730 = vpack.c.b16 %v721, %v720
        %v731 = vpack.c.b16 %v723, %v722
        %740 = vmatprep.subr.bf16.mxu0 0
        %741 = vmatpush1.bf16.msra.mxu0 %v724
        %742 = vmatprep.subr.bf16.mxu0 0
        %743 = vmatpush1.bf16.msra.mxu0 %v725
        %744 = vmatprep.subr.bf16.mxu0 0
        %745 = vmatpush1.bf16.msra.mxu0 %v726
        %746 = vmatprep.subr.bf16.mxu0 0
        %747 = vmatpush1.bf16.msra.mxu0 %v727
        %748 = vmatprep.subr.bf16.mxu0 0
        %749 = vmatpush1.bf16.msra.mxu0 %v728
        %750 = vmatprep.subr.bf16.mxu0 0
        %751 = vmatpush1.bf16.msra.mxu0 %v729
        %752 = vmatprep.subr.bf16.mxu0 0
        %753 = vmatpush1.bf16.msra.mxu0 %v730
        %754 = vmatprep.subr.bf16.mxu0 0
        %755 = vmatpush1.bf16.msra.mxu0 %v731
        %756 = vmatprep.subr.bf16.mxu0 0
        %757 = vmatpush1.bf16.msra.mxu0 0
        %758 = vmatprep.subr.bf16.mxu0 0
        %759 = vmatpush1.bf16.msra.mxu0 0
        %760 = vmatprep.subr.bf16.mxu0 0
        %761 = vmatpush1.bf16.msra.mxu0 0
        %762 = vmatprep.subr.bf16.mxu0 0
        %763 = vmatpush1.bf16.msra.mxu0 0
        %764 = vmatprep.subr.bf16.mxu0 0
        %765 = vmatpush1.bf16.msra.mxu0 0
        %766 = vmatprep.subr.bf16.mxu0 0
        %767 = vmatpush1.bf16.msra.mxu0 0
        %768 = vmatprep.subr.bf16.mxu0 0
        %769 = vmatpush1.bf16.msra.mxu0 0
        %770 = vmatprep.subr.bf16.mxu0 0
        %771 = vmatpush1.bf16.msra.mxu0 0
        %772 = vmatprep.mubr.bf16.mxu0 0
        %773 = vmatmul.mubr.bf16.gmra.mrb[0].mxu0 %v668
        %v774 = vpop.f32.mrb[0].mxu0
        %v775 = vadd.f32 %v690, %v774
        %v776 = vpop.f32.mrb[0].mxu0
        %v777 = vpop.f32.mrb[0].mxu0
        %v778 = vpop.f32.mrb[0].mxu0
        %779 = vdwg.mxu0
        %v780 = vadd.f32 %v775, %v554
        %781 = vst [vmem:[%s447] sm:$0xff] %v780
        %s782 = sand.u32 %s242, 1
        %s783 = scalar_lea.sflag [#allocation4], %s782
        %s784 = sand.u32 %s242, 1
        %s785 = smul.addr %s784, 8
        %s786 = scalar_lea.vmem [#allocation11], %s785
        // Predicated region
        $region77: #{tpu_custom_call.1} parent=55 // pred_check
          %p787 = pneg %p252
        $region78: #{tpu_custom_call.1} parent=55 // pred_check_branch
          %789 = sbr.rel (%p787) target = $region80
        $region79: #{tpu_custom_call.1} parent=55 // pred_region
          %s791 = ssub.s32 128, 128
          %792 = vsyncadd %s783, %s791
          %s793 = smul.addr %s30, 128
          %s794 = scalar_lea.hbm %s9, %s793
          %s796 = sshll.u32 %s786, 4
          %s797 = int_to_ptr.vmem [resolvable:$true] %s796
          %799 = dma.vmem_to_hbm [thread:$0]  %s797, 128, %s794, %s783
        $region80: #{tpu_custom_call.1} parent=55 // pred_fallthru
          _
      $region56: #{tpu_custom_call.1} parent=5 // pred_fallthru
        _
      %p800 = scmp.le.s32.totalorder 2, %s25
      // Predicated region
      $region81: #{tpu_custom_call.1} parent=5 // pred_check
        %p801 = pneg %p800
      $region82: #{tpu_custom_call.1} parent=5 // pred_check_branch
        %803 = sbr.rel (%p801) target = $region84
      $region83: #{tpu_custom_call.1} parent=5 // pred_region
        %s804 = ssub.s32 %s25, 2
        // Predicated region
        $region85: #{tpu_custom_call.1} parent=83 // pred_check
          %p805 = pneg %p258
        $region86: #{tpu_custom_call.1} parent=83 // pred_check_branch
          %807 = sbr.rel (%p805) target = $region88
        $region87: #{tpu_custom_call.1} parent=83 // pred_region
          %s808 = sand.u32 %s243, 1
          %s809 = scalar_lea.sflag [#allocation4], %s808
          %s810 = sand.u32 %s243, 1
          %s811 = smul.addr %s810, 8
          %s812 = scalar_lea.vmem [#allocation11], %s811
          %813 = dma.done %s809, 128
        $region88: #{tpu_custom_call.1} parent=83 // pred_fallthru
          _
      $region84: #{tpu_custom_call.1} parent=5 // pred_fallthru
        _
    $region6: #{tpu_custom_call.1} parent=1 // loop_footer
      %s29 = sadd.s32 1, %s25
    $region7: #{tpu_custom_call.1} parent=1 // loop_footer_branch
      %24 = sbr.rel target = $region3
    $region8: #{tpu_custom_call.1} parent=1 // loop_exit
      _
    %814 = vsyncpa [#allocation3], 1
    %s815 = scalar_lea.sflag [#allocation3], 1
    %816 = vsyncpa %s815, 1
    %817 = vsyncpa [#allocation6], 1
    %s818 = scalar_lea.sflag [#allocation6], 1
    %819 = vsyncpa %s818, 1
    %820 = vsyncpa [#allocation9], 1
    %821 = vsyncpa [#allocation4], 1
    %s822 = scalar_lea.sflag [#allocation4], 1
    %823 = vsyncpa %s822, 1

</llo_original>
